<compile_context>
chip_gen: v6e
topology: v6e:2x2x1
jax: 0.10.0
libtpu: 0.0.40
codegen_flags: <defaults>
</compile_context>

<pallas_src>
import functools

import jax
import jax.numpy as jnp
from jax.experimental import pallas as pl
from jax.experimental.pallas import tpu as pltpu


# ----------------------------------------------------------------------------
# Fused kernel: all conv+LN+ReLU layers + proj + residual + mask, one batch
# element per grid step.
# ----------------------------------------------------------------------------
def fused_conv_relu_norm_kernel(x_ref, m_ref, w_ref, b_ref, g_ref, be_ref,
                                wp_ref, bp_ref, o_ref, h_scratch, col_scratch,
                                *, n_layers, kernel_size, eps):
    """Shapes (per grid step):
      x_ref:     (1, H, T)      input, channels zero-padded to H, NCT, f32
      m_ref:     (1, 1, T)      mask, f32
      w_ref:     (L, K*H, H)    stacked conv weights, taps folded into the
                                contraction dim, bf16
      b_ref:     (L, 1, H)      conv biases, f32
      g_ref:     (L, 1, H)      LayerNorm gammas, f32
      be_ref:    (L, 1, H)      LayerNorm betas, f32
      wp_ref:    (H, Cout)      1x1 proj weight, bf16
      bp_ref:    (1, Cout)      proj bias, f32
      o_ref:     (1, Cout, T)   output, NCT layout
      h_scratch: (T + K - 1, H) persistent padded activation buffer, bf16 (VMEM)
      col_scratch: (T, K*H)     im2col buffer for the fused tap matmul, bf16
    """
    H = x_ref.shape[1]
    T = x_ref.shape[2]
    c_out = wp_ref.shape[1]
    K = kernel_size
    pad = K // 2

    x_nct = x_ref[0]                       # (H, T)  original (unmasked) input, f32
    m_nct = m_ref[0]                       # (1, T)
    mt = m_nct.T                           # (T, 1)  mask, time-major

    # Zero ONLY the halo rows (they remain zero for every layer => "same"
    # zero padding of every conv).  Interior rows are overwritten below.
    h_scratch[0:pad, :] = jnp.zeros((pad, H), dtype=h_scratch.dtype)
    h_scratch[pad + T:pad + T + pad, :] = jnp.zeros((pad, H), dtype=h_scratch.dtype)

    # Masked, time-major layer-0 input, stored in bf16 (MXU operand precision).
    h_scratch[pad:pad + T, :] = (x_nct * m_nct).T.astype(h_scratch.dtype)

    for l in range(n_layers):
        # im2col: build the (T, K*H) tap matrix with K shifted copies of the
        # resident padded buffer, then ONE deep matmul per layer
        # (contraction depth K*H instead of K shallow H-deep dots).
        for k in range(K):
            col_scratch[:, k * H:(k + 1) * H] = h_scratch[k:k + T, :]

        acc = jnp.dot(col_scratch[...], w_ref[l],
                      preferred_element_type=jnp.float32)       # (T, H) f32
        acc = acc + b_ref[l]                                     # (1, H) broadcast

        # LayerNorm over channels (torch dim=1 in NCT == last dim here),
        # single-pass mean / E[x^2] in f32, variance clamped to >= 0.
        mean = jnp.mean(acc, axis=1, keepdims=True)
        meansq = jnp.mean(acc * acc, axis=1, keepdims=True)
        var = jnp.maximum(meansq - mean * mean, 0.0)
        y = (acc - mean) * jax.lax.rsqrt(var + eps)
        y = y * g_ref[l] + be_ref[l]

        # ReLU (+ eval-mode dropout == identity).  Pre-apply the {0,1} mask so
        # the buffer is ready as the next layer's conv input; this does not
        # change the final output (it is masked again at the end).
        y = jnp.maximum(y, 0.0) * mt
        h_scratch[pad:pad + T, :] = y.astype(h_scratch.dtype)

    # Final 1x1 projection + residual + mask, written back in NCT layout
    # (lane dimension = T).
    h = h_scratch[pad:pad + T, :]                                # (T, H) bf16, masked
    p = jnp.dot(h, wp_ref[...],
                preferred_element_type=jnp.float32) + bp_ref[...]  # (T, Cout) f32
    out_nct = (x_nct[0:c_out, :] + p.T) * m_nct                  # (Cout, T)
    o_ref[0] = out_nct.astype(o_ref.dtype)


# ----------------------------------------------------------------------------
# Wrapper
# ----------------------------------------------------------------------------
def conv_relu_norm(x, x_mask, params, eps=1e-4):
    """Forward pass of ConvReluNorm.

    x:      (B, C_in, T)  float32   (PyTorch NCT layout)
    x_mask: (B, 1, T)     float32
    returns (B, C_out, T)
    """
    B, c_in, T = x.shape
    conv_w = params["conv_w"]            # (L, K, H, H), layer 0 zero-padded in Cin
    L, K, H, _ = conv_w.shape
    c_out = params["proj_w"].shape[1]
    assert K % 2 == 1, "kernel_size must be odd for 'same' padding"
    assert c_in == c_out, "residual requires in_channels == out_channels"
    pad = K // 2

    # Zero-pad input channels to H to match the stacked layer-0 weight (padded
    # channels hit zero weights => zero contribution).  Tiny op; no-op if c_in==H.
    x_in = jnp.pad(x, ((0, 0), (0, H - c_in), (0, 0))) if c_in < H else x

    # MXU weights: fold taps into the contraction dim and cast to bf16
    # (f32 accumulation happens in-kernel via preferred_element_type).
    # In production these would be pre-packed once, not per call.
    w_mxu = conv_w.reshape(L, K * H, H).astype(jnp.bfloat16)      # (L, K*H, H)
    wp_mxu = params["proj_w"].astype(jnp.bfloat16)                # (H, Cout)

    kernel = functools.partial(fused_conv_relu_norm_kernel,
                               n_layers=L, kernel_size=K, eps=eps)

    # Explicit scoped-VMEM budget (v5e default is only 16 MiB).
    f32, bf16 = 4, 2
    vmem_need = (
        2 * (H * T + T + c_out * T) * f32            # x, mask, out (double-buffered)
        + 2 * (L * K * H * H + H * c_out) * bf16     # bf16 weights (double-buffered)
        + 2 * (3 * L * H + c_out) * f32              # conv biases + LN params
        + ((T + 2 * pad) * H + T * K * H) * bf16     # activation + im2col scratch
    )
    vmem_limit = int(min(max(1.5 * vmem_need + (4 << 20), 32 << 20), 96 << 20))

    return pl.pallas_call(
        kernel,
        out_shape=jax.ShapeDtypeStruct((B, c_out, T), x.dtype),
        grid=(B,),
        in_specs=[
            pl.BlockSpec((1, H, T), lambda i: (i, 0, 0)),
            pl.BlockSpec((1, 1, T), lambda i: (i, 0, 0)),
            # Parameters: full blocks with constant index maps -> DMA'd once.
            # TODO(synk): pipeline_mode=pl.Buffered(1) here to drop the second
            #             (never-used) pipeline buffer on v7x's 64 MiB VMEM.
            pl.BlockSpec((L, K * H, H), lambda i: (0, 0, 0)),
            pl.BlockSpec((L, 1, H), lambda i: (0, 0, 0)),
            pl.BlockSpec((L, 1, H), lambda i: (0, 0, 0)),
            pl.BlockSpec((L, 1, H), lambda i: (0, 0, 0)),
            pl.BlockSpec((H, c_out), lambda i: (0, 0)),
            pl.BlockSpec((1, c_out), lambda i: (0, 0)),
        ],
        out_specs=pl.BlockSpec((1, c_out, T), lambda i: (i, 0, 0)),
        scratch_shapes=[
            pltpu.VMEM((T + 2 * pad, H), jnp.bfloat16),   # padded activations
            pltpu.VMEM((T, K * H), jnp.bfloat16),         # im2col buffer
        ],
        compiler_params=pltpu.CompilerParams(
            dimension_semantics=("parallel",),
            vmem_limit_bytes=vmem_limit),
    )(x_in, x_mask, w_mxu, params["conv_b"], params["gamma"], params["beta"],
      wp_mxu, params["proj_b"])


# ----------------------------------------------------------------------------
# Pure-JAX f32 reference (for correctness check)
# ----------------------------------------------------------------------------
def reference(x, x_mask, params, eps=1e-4):
    conv_w, conv_b = params["conv_w"], params["conv_b"]
    gamma, beta = params["gamma"], params["beta"]
    L, K, H, _ = conv_w.shape
    B, c_in, T = x.shape
    pad = K // 2

    xt = jnp.transpose(x, (0, 2, 1))                    # (B, T, Cin)
    m = jnp.transpose(x_mask, (0, 2, 1))                # (B, T, 1)
    x_org = xt
    h = jnp.pad(xt, ((0, 0), (0, 0), (0, H - c_in))) if c_in < H else xt

    for l in range(L):
        xm = h * m
        xp = jnp.pad(xm, ((0, 0), (pad, pad), (0, 0)))
        acc = sum(jnp.einsum("btc,cd->btd", xp[:, k:k + T, :], conv_w[l, k])
                  for k in range(K)) + conv_b[l]
        mean = jnp.mean(acc, axis=-1, keepdims=True)
        var = jnp.mean((acc - mean) ** 2, axis=-1, keepdims=True)
        y = (acc - mean) * jax.lax.rsqrt(var + eps) * gamma[l] + beta[l]
        h = jnp.maximum(y, 0.0)

    out = (x_org + jnp.einsum("bth,ho->bto", h, params["proj_w"])
           + params["proj_b"][0]) * m
    return jnp.transpose(out, (0, 2, 1))


# ----------------------------------------------------------------------------
# Deterministic parameter construction (matches module __init__ shapes;
# weights stacked tap-major, layer 0 zero-padded in Cin to H)
# ----------------------------------------------------------------------------
def make_params(key, in_channels, hidden_channels, out_channels,
                kernel_size, n_layers):
    ws, bs, gs, betas = [], [], [], []
    cin = in_channels
    for _ in range(n_layers):
        key, kw, kb = jax.random.split(key, 3)
        w = 0.1 * jax.random.normal(kw, (kernel_size, cin, hidden_channels),
                                    dtype=jnp.float32)
        if cin < hidden_channels:
            w = jnp.pad(w, ((0, 0), (0, hidden_channels - cin), (0, 0)))
        ws.append(w)
        bs.append(0.1 * jax.random.normal(kb, (1, hidden_channels),
                                          dtype=jnp.float32))
        gs.append(jnp.ones((1, hidden_channels), dtype=jnp.float32))
        betas.append(jnp.zeros((1, hidden_channels), dtype=jnp.float32))
        cin = hidden_channels

    # The module zero-inits proj (weight.data.zero_()); the forward pass is
    # parameter-agnostic, so use small random proj weights here so the
    # correctness check exercises the full conv/LN/ReLU path (zero proj would
    # make the output trivially equal to x_org * mask).
    key, kp, kpb = jax.random.split(key, 3)
    proj_w = 0.1 * jax.random.normal(kp, (hidden_channels, out_channels),
                                     dtype=jnp.float32)
    proj_b = 0.1 * jax.random.normal(kpb, (1, out_channels), dtype=jnp.float32)

    return dict(conv_w=jnp.stack(ws),        # (L, K, H, H)
                conv_b=jnp.stack(bs),        # (L, 1, H)
                gamma=jnp.stack(gs),         # (L, 1, H)
                beta=jnp.stack(betas),       # (L, 1, H)
                proj_w=proj_w,               # (H, C_out)
                proj_b=proj_b)               # (1, C_out)


if __name__ == "__main__":
    B, C_IN, HID, C_OUT, K, N_LAYERS, T = 2, 4, 32, 4, 3, 3, 16

    key = jax.random.PRNGKey(0)
    key, kx = jax.random.split(key)
    x = jax.random.normal(kx, (B, C_IN, T), dtype=jnp.float32)
    # mask: first sequence full length, second one shorter
    lengths = jnp.array([T, T - 5])
    x_mask = (jnp.arange(T)[None, None, :] < lengths[:, None, None]).astype(jnp.float32)

    params = make_params(key, C_IN, HID, C_OUT, K, N_LAYERS)

    out = conv_relu_norm(x, x_mask, params)
    out = jax.block_until_ready(out)

    ref = reference(x, x_mask, params)
    assert out.shape == (B, C_OUT, T), out.shape
    err = float(jnp.max(jnp.abs(out - ref)))
    # bf16 MXU operands (f32 accumulation) vs f32 reference -> loosened tolerance.
    assert jnp.allclose(out, ref, atol=5e-2, rtol=5e-2), err

    print("KERNEL_OK")
</pallas_src>

<mosaic_0001>
module attributes {stable_mosaic.version = 11 : i64} {
  func.func @fused_conv_relu_norm_kernel(%arg0: i32, %arg1: memref<1x32x16xf32, #tpu.memory_space<vmem>>, %arg2: memref<1x1x16xf32, #tpu.memory_space<vmem>>, %arg3: memref<3x96x32xbf16, #tpu.memory_space<vmem>>, %arg4: memref<3x1x32xf32, #tpu.memory_space<vmem>>, %arg5: memref<3x1x32xf32, #tpu.memory_space<vmem>>, %arg6: memref<3x1x32xf32, #tpu.memory_space<vmem>>, %arg7: memref<32x4xbf16, #tpu.memory_space<vmem>>, %arg8: memref<1x4xf32, #tpu.memory_space<vmem>>, %arg9: memref<1x4x16xf32, #tpu.memory_space<vmem>>, %arg10: memref<18x32xbf16, #tpu.memory_space<vmem>>, %arg11: memref<16x96xbf16, #tpu.memory_space<vmem>>) attributes {dimension_semantics = [#tpu.dimension_semantics<parallel>], iteration_bounds = array<i64: 2>, scalar_prefetch = 0 : i64, scratch_operands = 2 : i64, tpu.core_type = #tpu.core_type<tc>, window_params = [{transform_indices = @transform_0, window_bounds = array<i64: 1, 32, 16>}, {transform_indices = @transform_1, window_bounds = array<i64: 1, 1, 16>}, {pipeline_mode = #tpu.pipeline_mode<synchronous>, transform_indices = @transform_2, window_bounds = array<i64: 3, 96, 32>}, {pipeline_mode = #tpu.pipeline_mode<synchronous>, transform_indices = @transform_3, window_bounds = array<i64: 3, 1, 32>}, {pipeline_mode = #tpu.pipeline_mode<synchronous>, transform_indices = @transform_4, window_bounds = array<i64: 3, 1, 32>}, {pipeline_mode = #tpu.pipeline_mode<synchronous>, transform_indices = @transform_5, window_bounds = array<i64: 3, 1, 32>}, {pipeline_mode = #tpu.pipeline_mode<synchronous>, transform_indices = @transform_6, window_bounds = array<i64: 32, 4>}, {pipeline_mode = #tpu.pipeline_mode<synchronous>, transform_indices = @transform_7, window_bounds = array<i64: 1, 4>}, {transform_indices = @transform_8, window_bounds = array<i64: 1, 4, 16>}]} {
    %c0 = arith.constant 0 : index
    %c0_0 = arith.constant 0 : index
    %c0_1 = arith.constant 0 : index
    %0 = vector.load %arg1[%c0, %c0_0, %c0_1] : memref<1x32x16xf32, #tpu.memory_space<vmem>>, vector<1x32x16xf32>
    %1 = vector.shape_cast %0 : vector<1x32x16xf32> to vector<32x16xf32>
    %c0_2 = arith.constant 0 : index
    %c0_3 = arith.constant 0 : index
    %c0_4 = arith.constant 0 : index
    %2 = vector.load %arg2[%c0_2, %c0_3, %c0_4] : memref<1x1x16xf32, #tpu.memory_space<vmem>>, vector<1x1x16xf32>
    %3 = vector.shape_cast %2 : vector<1x1x16xf32> to vector<1x16xf32>
    %4 = tpu.transpose %3, [1, 0] : vector<1x16xf32> -> vector<16x1xf32>
    %cst = arith.constant 0.000000e+00 : bf16
    %5 = vector.broadcast %cst : bf16 to vector<1x32xbf16>
    %c0_5 = arith.constant 0 : index
    %c0_6 = arith.constant 0 : index
    %6 = vector.load %arg10[%c0_5, %c0_6] : memref<18x32xbf16, #tpu.memory_space<vmem>>, vector<1x32xbf16>
    tpu.vector_store %arg10[%c0_5, %c0_6], %5 {strides = array<i32>} : memref<18x32xbf16, #tpu.memory_space<vmem>>, vector<1x32xbf16>,
    %cst_7 = arith.constant 0.000000e+00 : bf16
    %7 = vector.broadcast %cst_7 : bf16 to vector<1x32xbf16>
    %c17 = arith.constant 17 : index
    %c0_8 = arith.constant 0 : index
    %8 = vector.load %arg10[%c17, %c0_8] : memref<18x32xbf16, #tpu.memory_space<vmem>>, vector<1x32xbf16>
    tpu.vector_store %arg10[%c17, %c0_8], %7 {strides = array<i32>} : memref<18x32xbf16, #tpu.memory_space<vmem>>, vector<1x32xbf16>,
    %9 = vector.broadcast %3 : vector<1x16xf32> to vector<32x16xf32>
    %10 = arith.mulf %1, %9 : vector<32x16xf32>
    %11 = tpu.transpose %10, [1, 0] : vector<32x16xf32> -> vector<16x32xf32>
    %12 = arith.truncf %11 : vector<16x32xf32> to vector<16x32xbf16>
    %c1 = arith.constant 1 : index
    %c0_9 = arith.constant 0 : index
    %13 = vector.load %arg10[%c1, %c0_9] : memref<18x32xbf16, #tpu.memory_space<vmem>>, vector<16x32xbf16>
    tpu.vector_store %arg10[%c1, %c0_9], %12 {strides = array<i32>} : memref<18x32xbf16, #tpu.memory_space<vmem>>, vector<16x32xbf16>,
    %c0_10 = arith.constant 0 : index
    %c0_11 = arith.constant 0 : index
    %14 = vector.load %arg10[%c0_10, %c0_11] : memref<18x32xbf16, #tpu.memory_space<vmem>>, vector<16x32xbf16>
    %c0_12 = arith.constant 0 : index
    %c0_13 = arith.constant 0 : index
    %15 = vector.load %arg11[%c0_12, %c0_13] : memref<16x96xbf16, #tpu.memory_space<vmem>>, vector<16x32xbf16>
    tpu.vector_store %arg11[%c0_12, %c0_13], %14 {strides = array<i32>} : memref<16x96xbf16, #tpu.memory_space<vmem>>, vector<16x32xbf16>,
    %c1_14 = arith.constant 1 : index
    %c0_15 = arith.constant 0 : index
    %16 = vector.load %arg10[%c1_14, %c0_15] : memref<18x32xbf16, #tpu.memory_space<vmem>>, vector<16x32xbf16>
    %c0_16 = arith.constant 0 : index
    %c32 = arith.constant 32 : index
    %17 = vector.load %arg11[%c0_16, %c32] : memref<16x96xbf16, #tpu.memory_space<vmem>>, vector<16x32xbf16>
    tpu.vector_store %arg11[%c0_16, %c32], %16 {strides = array<i32>} : memref<16x96xbf16, #tpu.memory_space<vmem>>, vector<16x32xbf16>,
    %c2 = arith.constant 2 : index
    %c0_17 = arith.constant 0 : index
    %18 = vector.load %arg10[%c2, %c0_17] : memref<18x32xbf16, #tpu.memory_space<vmem>>, vector<16x32xbf16>
    %c0_18 = arith.constant 0 : index
    %c64 = arith.constant 64 : index
    %19 = vector.load %arg11[%c0_18, %c64] : memref<16x96xbf16, #tpu.memory_space<vmem>>, vector<16x32xbf16>
    tpu.vector_store %arg11[%c0_18, %c64], %18 {strides = array<i32>} : memref<16x96xbf16, #tpu.memory_space<vmem>>, vector<16x32xbf16>,
    %c0_19 = arith.constant 0 : index
    %c0_20 = arith.constant 0 : index
    %20 = vector.load %arg11[%c0_19, %c0_20] : memref<16x96xbf16, #tpu.memory_space<vmem>>, vector<16x96xbf16>
    %c0_21 = arith.constant 0 : index
    %c0_22 = arith.constant 0 : index
    %c0_23 = arith.constant 0 : index
    %21 = vector.load %arg3[%c0_21, %c0_22, %c0_23] : memref<3x96x32xbf16, #tpu.memory_space<vmem>>, vector<1x96x32xbf16>
    %22 = vector.shape_cast %21 : vector<1x96x32xbf16> to vector<96x32xbf16>
    %cst_24 = arith.constant dense<0.000000e+00> : vector<16x32xf32>
    %23 = tpu.matmul %20, %22, %cst_24 {dimension_numbers = #tpu.dot_dimension_numbers<[1], [0], [0], [1], [0, 0, 1, 1], [], []>} : vector<16x96xbf16>, vector<96x32xbf16>, vector<16x32xf32> -> vector<16x32xf32>
    %c0_25 = arith.constant 0 : index
    %c0_26 = arith.constant 0 : index
    %c0_27 = arith.constant 0 : index
    %24 = vector.load %arg4[%c0_25, %c0_26, %c0_27] : memref<3x1x32xf32, #tpu.memory_space<vmem>>, vector<1x1x32xf32>
    %25 = vector.shape_cast %24 : vector<1x1x32xf32> to vector<1x32xf32>
    %26 = vector.broadcast %25 : vector<1x32xf32> to vector<16x32xf32>
    %27 = arith.addf %23, %26 : vector<16x32xf32>
    %cst_28 = arith.constant dense<0.000000e+00> : vector<16xf32>
    %28 = vector.multi_reduction <add>, %27, %cst_28 [1] : vector<16x32xf32> to vector<16xf32>
    %29 = vector.shape_cast %28 : vector<16xf32> to vector<16x1xf32>
    %cst_29 = arith.constant 3.200000e+01 : f32
    %30 = vector.broadcast %cst_29 : f32 to vector<16x1xf32>
    %31 = arith.divf %29, %30 : vector<16x1xf32>
    %32 = arith.mulf %27, %27 : vector<16x32xf32>
    %cst_30 = arith.constant dense<0.000000e+00> : vector<16xf32>
    %33 = vector.multi_reduction <add>, %32, %cst_30 [1] : vector<16x32xf32> to vector<16xf32>
    %34 = vector.shape_cast %33 : vector<16xf32> to vector<16x1xf32>
    %cst_31 = arith.constant 3.200000e+01 : f32
    %35 = vector.broadcast %cst_31 : f32 to vector<16x1xf32>
    %36 = arith.divf %34, %35 : vector<16x1xf32>
    %37 = arith.mulf %31, %31 : vector<16x1xf32>
    %38 = arith.subf %36, %37 : vector<16x1xf32>
    %cst_32 = arith.constant 0.000000e+00 : f32
    %39 = vector.broadcast %cst_32 : f32 to vector<16x1xf32>
    %40 = arith.maximumf %38, %39 : vector<16x1xf32>
    %41 = vector.broadcast %31 : vector<16x1xf32> to vector<16x32xf32>
    %42 = arith.subf %27, %41 : vector<16x32xf32>
    %cst_33 = arith.constant 9.99999974E-5 : f32
    %43 = vector.broadcast %cst_33 : f32 to vector<16x1xf32>
    %44 = arith.addf %40, %43 : vector<16x1xf32>
    %45 = math.rsqrt %44 : vector<16x1xf32>
    %46 = vector.broadcast %45 : vector<16x1xf32> to vector<16x32xf32>
    %47 = arith.mulf %42, %46 : vector<16x32xf32>
    %c0_34 = arith.constant 0 : index
    %c0_35 = arith.constant 0 : index
    %c0_36 = arith.constant 0 : index
    %48 = vector.load %arg5[%c0_34, %c0_35, %c0_36] : memref<3x1x32xf32, #tpu.memory_space<vmem>>, vector<1x1x32xf32>
    %49 = vector.shape_cast %48 : vector<1x1x32xf32> to vector<1x32xf32>
    %50 = vector.broadcast %49 : vector<1x32xf32> to vector<16x32xf32>
    %51 = arith.mulf %47, %50 : vector<16x32xf32>
    %c0_37 = arith.constant 0 : index
    %c0_38 = arith.constant 0 : index
    %c0_39 = arith.constant 0 : index
    %52 = vector.load %arg6[%c0_37, %c0_38, %c0_39] : memref<3x1x32xf32, #tpu.memory_space<vmem>>, vector<1x1x32xf32>
    %53 = vector.shape_cast %52 : vector<1x1x32xf32> to vector<1x32xf32>
    %54 = vector.broadcast %53 : vector<1x32xf32> to vector<16x32xf32>
    %55 = arith.addf %51, %54 : vector<16x32xf32>
    %cst_40 = arith.constant 0.000000e+00 : f32
    %56 = vector.broadcast %cst_40 : f32 to vector<16x32xf32>
    %57 = arith.maximumf %55, %56 : vector<16x32xf32>
    %58 = vector.broadcast %4 : vector<16x1xf32> to vector<16x32xf32>
    %59 = arith.mulf %57, %58 : vector<16x32xf32>
    %60 = arith.truncf %59 : vector<16x32xf32> to vector<16x32xbf16>
    %c1_41 = arith.constant 1 : index
    %c0_42 = arith.constant 0 : index
    %61 = vector.load %arg10[%c1_41, %c0_42] : memref<18x32xbf16, #tpu.memory_space<vmem>>, vector<16x32xbf16>
    tpu.vector_store %arg10[%c1_41, %c0_42], %60 {strides = array<i32>} : memref<18x32xbf16, #tpu.memory_space<vmem>>, vector<16x32xbf16>,
    %c0_43 = arith.constant 0 : index
    %c0_44 = arith.constant 0 : index
    %62 = vector.load %arg10[%c0_43, %c0_44] : memref<18x32xbf16, #tpu.memory_space<vmem>>, vector<16x32xbf16>
    %c0_45 = arith.constant 0 : index
    %c0_46 = arith.constant 0 : index
    %63 = vector.load %arg11[%c0_45, %c0_46] : memref<16x96xbf16, #tpu.memory_space<vmem>>, vector<16x32xbf16>
    tpu.vector_store %arg11[%c0_45, %c0_46], %62 {strides = array<i32>} : memref<16x96xbf16, #tpu.memory_space<vmem>>, vector<16x32xbf16>,
    %c1_47 = arith.constant 1 : index
    %c0_48 = arith.constant 0 : index
    %64 = vector.load %arg10[%c1_47, %c0_48] : memref<18x32xbf16, #tpu.memory_space<vmem>>, vector<16x32xbf16>
    %c0_49 = arith.constant 0 : index
    %c32_50 = arith.constant 32 : index
    %65 = vector.load %arg11[%c0_49, %c32_50] : memref<16x96xbf16, #tpu.memory_space<vmem>>, vector<16x32xbf16>
    tpu.vector_store %arg11[%c0_49, %c32_50], %64 {strides = array<i32>} : memref<16x96xbf16, #tpu.memory_space<vmem>>, vector<16x32xbf16>,
    %c2_51 = arith.constant 2 : index
    %c0_52 = arith.constant 0 : index
    %66 = vector.load %arg10[%c2_51, %c0_52] : memref<18x32xbf16, #tpu.memory_space<vmem>>, vector<16x32xbf16>
    %c0_53 = arith.constant 0 : index
    %c64_54 = arith.constant 64 : index
    %67 = vector.load %arg11[%c0_53, %c64_54] : memref<16x96xbf16, #tpu.memory_space<vmem>>, vector<16x32xbf16>
    tpu.vector_store %arg11[%c0_53, %c64_54], %66 {strides = array<i32>} : memref<16x96xbf16, #tpu.memory_space<vmem>>, vector<16x32xbf16>,
    %c0_55 = arith.constant 0 : index
    %c0_56 = arith.constant 0 : index
    %68 = vector.load %arg11[%c0_55, %c0_56] : memref<16x96xbf16, #tpu.memory_space<vmem>>, vector<16x96xbf16>
    %c1_57 = arith.constant 1 : index
    %c0_58 = arith.constant 0 : index
    %c0_59 = arith.constant 0 : index
    %69 = vector.load %arg3[%c1_57, %c0_58, %c0_59] : memref<3x96x32xbf16, #tpu.memory_space<vmem>>, vector<1x96x32xbf16>
    %70 = vector.shape_cast %69 : vector<1x96x32xbf16> to vector<96x32xbf16>
    %cst_60 = arith.constant dense<0.000000e+00> : vector<16x32xf32>
    %71 = tpu.matmul %68, %70, %cst_60 {dimension_numbers = #tpu.dot_dimension_numbers<[1], [0], [0], [1], [0, 0, 1, 1], [], []>} : vector<16x96xbf16>, vector<96x32xbf16>, vector<16x32xf32> -> vector<16x32xf32>
    %c1_61 = arith.constant 1 : index
    %c0_62 = arith.constant 0 : index
    %c0_63 = arith.constant 0 : index
    %72 = vector.load %arg4[%c1_61, %c0_62, %c0_63] : memref<3x1x32xf32, #tpu.memory_space<vmem>>, vector<1x1x32xf32>
    %73 = vector.shape_cast %72 : vector<1x1x32xf32> to vector<1x32xf32>
    %74 = vector.broadcast %73 : vector<1x32xf32> to vector<16x32xf32>
    %75 = arith.addf %71, %74 : vector<16x32xf32>
    %cst_64 = arith.constant dense<0.000000e+00> : vector<16xf32>
    %76 = vector.multi_reduction <add>, %75, %cst_64 [1] : vector<16x32xf32> to vector<16xf32>
    %77 = vector.shape_cast %76 : vector<16xf32> to vector<16x1xf32>
    %cst_65 = arith.constant 3.200000e+01 : f32
    %78 = vector.broadcast %cst_65 : f32 to vector<16x1xf32>
    %79 = arith.divf %77, %78 : vector<16x1xf32>
    %80 = arith.mulf %75, %75 : vector<16x32xf32>
    %cst_66 = arith.constant dense<0.000000e+00> : vector<16xf32>
    %81 = vector.multi_reduction <add>, %80, %cst_66 [1] : vector<16x32xf32> to vector<16xf32>
    %82 = vector.shape_cast %81 : vector<16xf32> to vector<16x1xf32>
    %cst_67 = arith.constant 3.200000e+01 : f32
    %83 = vector.broadcast %cst_67 : f32 to vector<16x1xf32>
    %84 = arith.divf %82, %83 : vector<16x1xf32>
    %85 = arith.mulf %79, %79 : vector<16x1xf32>
    %86 = arith.subf %84, %85 : vector<16x1xf32>
    %cst_68 = arith.constant 0.000000e+00 : f32
    %87 = vector.broadcast %cst_68 : f32 to vector<16x1xf32>
    %88 = arith.maximumf %86, %87 : vector<16x1xf32>
    %89 = vector.broadcast %79 : vector<16x1xf32> to vector<16x32xf32>
    %90 = arith.subf %75, %89 : vector<16x32xf32>
    %cst_69 = arith.constant 9.99999974E-5 : f32
    %91 = vector.broadcast %cst_69 : f32 to vector<16x1xf32>
    %92 = arith.addf %88, %91 : vector<16x1xf32>
    %93 = math.rsqrt %92 : vector<16x1xf32>
    %94 = vector.broadcast %93 : vector<16x1xf32> to vector<16x32xf32>
    %95 = arith.mulf %90, %94 : vector<16x32xf32>
    %c1_70 = arith.constant 1 : index
    %c0_71 = arith.constant 0 : index
    %c0_72 = arith.constant 0 : index
    %96 = vector.load %arg5[%c1_70, %c0_71, %c0_72] : memref<3x1x32xf32, #tpu.memory_space<vmem>>, vector<1x1x32xf32>
    %97 = vector.shape_cast %96 : vector<1x1x32xf32> to vector<1x32xf32>
    %98 = vector.broadcast %97 : vector<1x32xf32> to vector<16x32xf32>
    %99 = arith.mulf %95, %98 : vector<16x32xf32>
    %c1_73 = arith.constant 1 : index
    %c0_74 = arith.constant 0 : index
    %c0_75 = arith.constant 0 : index
    %100 = vector.load %arg6[%c1_73, %c0_74, %c0_75] : memref<3x1x32xf32, #tpu.memory_space<vmem>>, vector<1x1x32xf32>
    %101 = vector.shape_cast %100 : vector<1x1x32xf32> to vector<1x32xf32>
    %102 = vector.broadcast %101 : vector<1x32xf32> to vector<16x32xf32>
    %103 = arith.addf %99, %102 : vector<16x32xf32>
    %cst_76 = arith.constant 0.000000e+00 : f32
    %104 = vector.broadcast %cst_76 : f32 to vector<16x32xf32>
    %105 = arith.maximumf %103, %104 : vector<16x32xf32>
    %106 = vector.broadcast %4 : vector<16x1xf32> to vector<16x32xf32>
    %107 = arith.mulf %105, %106 : vector<16x32xf32>
    %108 = arith.truncf %107 : vector<16x32xf32> to vector<16x32xbf16>
    %c1_77 = arith.constant 1 : index
    %c0_78 = arith.constant 0 : index
    %109 = vector.load %arg10[%c1_77, %c0_78] : memref<18x32xbf16, #tpu.memory_space<vmem>>, vector<16x32xbf16>
    tpu.vector_store %arg10[%c1_77, %c0_78], %108 {strides = array<i32>} : memref<18x32xbf16, #tpu.memory_space<vmem>>, vector<16x32xbf16>,
    %c0_79 = arith.constant 0 : index
    %c0_80 = arith.constant 0 : index
    %110 = vector.load %arg10[%c0_79, %c0_80] : memref<18x32xbf16, #tpu.memory_space<vmem>>, vector<16x32xbf16>
    %c0_81 = arith.constant 0 : index
    %c0_82 = arith.constant 0 : index
    %111 = vector.load %arg11[%c0_81, %c0_82] : memref<16x96xbf16, #tpu.memory_space<vmem>>, vector<16x32xbf16>
    tpu.vector_store %arg11[%c0_81, %c0_82], %110 {strides = array<i32>} : memref<16x96xbf16, #tpu.memory_space<vmem>>, vector<16x32xbf16>,
    %c1_83 = arith.constant 1 : index
    %c0_84 = arith.constant 0 : index
    %112 = vector.load %arg10[%c1_83, %c0_84] : memref<18x32xbf16, #tpu.memory_space<vmem>>, vector<16x32xbf16>
    %c0_85 = arith.constant 0 : index
    %c32_86 = arith.constant 32 : index
    %113 = vector.load %arg11[%c0_85, %c32_86] : memref<16x96xbf16, #tpu.memory_space<vmem>>, vector<16x32xbf16>
    tpu.vector_store %arg11[%c0_85, %c32_86], %112 {strides = array<i32>} : memref<16x96xbf16, #tpu.memory_space<vmem>>, vector<16x32xbf16>,
    %c2_87 = arith.constant 2 : index
    %c0_88 = arith.constant 0 : index
    %114 = vector.load %arg10[%c2_87, %c0_88] : memref<18x32xbf16, #tpu.memory_space<vmem>>, vector<16x32xbf16>
    %c0_89 = arith.constant 0 : index
    %c64_90 = arith.constant 64 : index
    %115 = vector.load %arg11[%c0_89, %c64_90] : memref<16x96xbf16, #tpu.memory_space<vmem>>, vector<16x32xbf16>
    tpu.vector_store %arg11[%c0_89, %c64_90], %114 {strides = array<i32>} : memref<16x96xbf16, #tpu.memory_space<vmem>>, vector<16x32xbf16>,
    %c0_91 = arith.constant 0 : index
    %c0_92 = arith.constant 0 : index
    %116 = vector.load %arg11[%c0_91, %c0_92] : memref<16x96xbf16, #tpu.memory_space<vmem>>, vector<16x96xbf16>
    %c2_93 = arith.constant 2 : index
    %c0_94 = arith.constant 0 : index
    %c0_95 = arith.constant 0 : index
    %117 = vector.load %arg3[%c2_93, %c0_94, %c0_95] : memref<3x96x32xbf16, #tpu.memory_space<vmem>>, vector<1x96x32xbf16>
    %118 = vector.shape_cast %117 : vector<1x96x32xbf16> to vector<96x32xbf16>
    %cst_96 = arith.constant dense<0.000000e+00> : vector<16x32xf32>
    %119 = tpu.matmul %116, %118, %cst_96 {dimension_numbers = #tpu.dot_dimension_numbers<[1], [0], [0], [1], [0, 0, 1, 1], [], []>} : vector<16x96xbf16>, vector<96x32xbf16>, vector<16x32xf32> -> vector<16x32xf32>
    %c2_97 = arith.constant 2 : index
    %c0_98 = arith.constant 0 : index
    %c0_99 = arith.constant 0 : index
    %120 = vector.load %arg4[%c2_97, %c0_98, %c0_99] : memref<3x1x32xf32, #tpu.memory_space<vmem>>, vector<1x1x32xf32>
    %121 = vector.shape_cast %120 : vector<1x1x32xf32> to vector<1x32xf32>
    %122 = vector.broadcast %121 : vector<1x32xf32> to vector<16x32xf32>
    %123 = arith.addf %119, %122 : vector<16x32xf32>
    %cst_100 = arith.constant dense<0.000000e+00> : vector<16xf32>
    %124 = vector.multi_reduction <add>, %123, %cst_100 [1] : vector<16x32xf32> to vector<16xf32>
    %125 = vector.shape_cast %124 : vector<16xf32> to vector<16x1xf32>
    %cst_101 = arith.constant 3.200000e+01 : f32
    %126 = vector.broadcast %cst_101 : f32 to vector<16x1xf32>
    %127 = arith.divf %125, %126 : vector<16x1xf32>
    %128 = arith.mulf %123, %123 : vector<16x32xf32>
    %cst_102 = arith.constant dense<0.000000e+00> : vector<16xf32>
    %129 = vector.multi_reduction <add>, %128, %cst_102 [1] : vector<16x32xf32> to vector<16xf32>
    %130 = vector.shape_cast %129 : vector<16xf32> to vector<16x1xf32>
    %cst_103 = arith.constant 3.200000e+01 : f32
    %131 = vector.broadcast %cst_103 : f32 to vector<16x1xf32>
    %132 = arith.divf %130, %131 : vector<16x1xf32>
    %133 = arith.mulf %127, %127 : vector<16x1xf32>
    %134 = arith.subf %132, %133 : vector<16x1xf32>
    %cst_104 = arith.constant 0.000000e+00 : f32
    %135 = vector.broadcast %cst_104 : f32 to vector<16x1xf32>
    %136 = arith.maximumf %134, %135 : vector<16x1xf32>
    %137 = vector.broadcast %127 : vector<16x1xf32> to vector<16x32xf32>
    %138 = arith.subf %123, %137 : vector<16x32xf32>
    %cst_105 = arith.constant 9.99999974E-5 : f32
    %139 = vector.broadcast %cst_105 : f32 to vector<16x1xf32>
    %140 = arith.addf %136, %139 : vector<16x1xf32>
    %141 = math.rsqrt %140 : vector<16x1xf32>
    %142 = vector.broadcast %141 : vector<16x1xf32> to vector<16x32xf32>
    %143 = arith.mulf %138, %142 : vector<16x32xf32>
    %c2_106 = arith.constant 2 : index
    %c0_107 = arith.constant 0 : index
    %c0_108 = arith.constant 0 : index
    %144 = vector.load %arg5[%c2_106, %c0_107, %c0_108] : memref<3x1x32xf32, #tpu.memory_space<vmem>>, vector<1x1x32xf32>
    %145 = vector.shape_cast %144 : vector<1x1x32xf32> to vector<1x32xf32>
    %146 = vector.broadcast %145 : vector<1x32xf32> to vector<16x32xf32>
    %147 = arith.mulf %143, %146 : vector<16x32xf32>
    %c2_109 = arith.constant 2 : index
    %c0_110 = arith.constant 0 : index
    %c0_111 = arith.constant 0 : index
    %148 = vector.load %arg6[%c2_109, %c0_110, %c0_111] : memref<3x1x32xf32, #tpu.memory_space<vmem>>, vector<1x1x32xf32>
    %149 = vector.shape_cast %148 : vector<1x1x32xf32> to vector<1x32xf32>
    %150 = vector.broadcast %149 : vector<1x32xf32> to vector<16x32xf32>
    %151 = arith.addf %147, %150 : vector<16x32xf32>
    %cst_112 = arith.constant 0.000000e+00 : f32
    %152 = vector.broadcast %cst_112 : f32 to vector<16x32xf32>
    %153 = arith.maximumf %151, %152 : vector<16x32xf32>
    %154 = vector.broadcast %4 : vector<16x1xf32> to vector<16x32xf32>
    %155 = arith.mulf %153, %154 : vector<16x32xf32>
    %156 = arith.truncf %155 : vector<16x32xf32> to vector<16x32xbf16>
    %c1_113 = arith.constant 1 : index
    %c0_114 = arith.constant 0 : index
    %157 = vector.load %arg10[%c1_113, %c0_114] : memref<18x32xbf16, #tpu.memory_space<vmem>>, vector<16x32xbf16>
    tpu.vector_store %arg10[%c1_113, %c0_114], %156 {strides = array<i32>} : memref<18x32xbf16, #tpu.memory_space<vmem>>, vector<16x32xbf16>,
    %c1_115 = arith.constant 1 : index
    %c0_116 = arith.constant 0 : index
    %158 = vector.load %arg10[%c1_115, %c0_116] : memref<18x32xbf16, #tpu.memory_space<vmem>>, vector<16x32xbf16>
    %c0_117 = arith.constant 0 : index
    %c0_118 = arith.constant 0 : index
    %159 = vector.load %arg7[%c0_117, %c0_118] : memref<32x4xbf16, #tpu.memory_space<vmem>>, vector<32x4xbf16>
    %cst_119 = arith.constant dense<0.000000e+00> : vector<16x4xf32>
    %160 = tpu.matmul %158, %159, %cst_119 {dimension_numbers = #tpu.dot_dimension_numbers<[1], [0], [0], [1], [0, 0, 1, 1], [], []>} : vector<16x32xbf16>, vector<32x4xbf16>, vector<16x4xf32> -> vector<16x4xf32>
    %c0_120 = arith.constant 0 : index
    %c0_121 = arith.constant 0 : index
    %161 = vector.load %arg8[%c0_120, %c0_121] : memref<1x4xf32, #tpu.memory_space<vmem>>, vector<1x4xf32>
    %162 = vector.broadcast %161 : vector<1x4xf32> to vector<16x4xf32>
    %163 = arith.addf %160, %162 : vector<16x4xf32>
    %164 = vector.extract_strided_slice %1 {offsets = [0, 0], sizes = [4, 16], strides = [1, 1]} : vector<32x16xf32> to vector<4x16xf32>
    %165 = tpu.transpose %163, [1, 0] : vector<16x4xf32> -> vector<4x16xf32>
    %166 = arith.addf %164, %165 : vector<4x16xf32>
    %167 = vector.broadcast %3 : vector<1x16xf32> to vector<4x16xf32>
    %168 = arith.mulf %166, %167 : vector<4x16xf32>
    %c0_122 = arith.constant 0 : index
    %c0_123 = arith.constant 0 : index
    %c0_124 = arith.constant 0 : index
    %169 = vector.load %arg9[%c0_122, %c0_123, %c0_124] : memref<1x4x16xf32, #tpu.memory_space<vmem>>, vector<1x4x16xf32>
    %170 = vector.shape_cast %169 : vector<1x4x16xf32> to vector<4x16xf32>
    %171 = vector.shape_cast %168 : vector<4x16xf32> to vector<1x4x16xf32>
    tpu.vector_store %arg9[%c0_122, %c0_123, %c0_124], %171 {strides = array<i32>} : memref<1x4x16xf32, #tpu.memory_space<vmem>>, vector<1x4x16xf32>,
    return
  }
  func.func @transform_0(%arg0: i32) -> (i32, i32, i32) {
    %c0_i32 = arith.constant 0 : i32
    %c0_i32_0 = arith.constant 0 : i32
    %c0_i32_1 = arith.constant 0 : i32
    return %arg0, %c0_i32, %c0_i32_0 : i32, i32, i32
  }
  func.func @transform_1(%arg0: i32) -> (i32, i32, i32) {
    %c0_i32 = arith.constant 0 : i32
    %c0_i32_0 = arith.constant 0 : i32
    %c0_i32_1 = arith.constant 0 : i32
    return %arg0, %c0_i32, %c0_i32_0 : i32, i32, i32
  }
  func.func @transform_2(%arg0: i32) -> (i32, i32, i32) {
    %c0_i32 = arith.constant 0 : i32
    %c0_i32_0 = arith.constant 0 : i32
    %c0_i32_1 = arith.constant 0 : i32
    %c0_i32_2 = arith.constant 0 : i32
    return %c0_i32, %c0_i32_0, %c0_i32_1 : i32, i32, i32
  }
  func.func @transform_3(%arg0: i32) -> (i32, i32, i32) {
    %c0_i32 = arith.constant 0 : i32
    %c0_i32_0 = arith.constant 0 : i32
    %c0_i32_1 = arith.constant 0 : i32
    %c0_i32_2 = arith.constant 0 : i32
    return %c0_i32, %c0_i32_0, %c0_i32_1 : i32, i32, i32
  }
  func.func @transform_4(%arg0: i32) -> (i32, i32, i32) {
    %c0_i32 = arith.constant 0 : i32
    %c0_i32_0 = arith.constant 0 : i32
    %c0_i32_1 = arith.constant 0 : i32
    %c0_i32_2 = arith.constant 0 : i32
    return %c0_i32, %c0_i32_0, %c0_i32_1 : i32, i32, i32
  }
  func.func @transform_5(%arg0: i32) -> (i32, i32, i32) {
    %c0_i32 = arith.constant 0 : i32
    %c0_i32_0 = arith.constant 0 : i32
    %c0_i32_1 = arith.constant 0 : i32
    %c0_i32_2 = arith.constant 0 : i32
    return %c0_i32, %c0_i32_0, %c0_i32_1 : i32, i32, i32
  }
  func.func @transform_6(%arg0: i32) -> (i32, i32) {
    %c0_i32 = arith.constant 0 : i32
    %c0_i32_0 = arith.constant 0 : i32
    %c0_i32_1 = arith.constant 0 : i32
    return %c0_i32, %c0_i32_0 : i32, i32
  }
  func.func @transform_7(%arg0: i32) -> (i32, i32) {
    %c0_i32 = arith.constant 0 : i32
    %c0_i32_0 = arith.constant 0 : i32
    %c0_i32_1 = arith.constant 0 : i32
    return %c0_i32, %c0_i32_0 : i32, i32
  }
  func.func @transform_8(%arg0: i32) -> (i32, i32, i32) {
    %c0_i32 = arith.constant 0 : i32
    %c0_i32_0 = arith.constant 0 : i32
    %c0_i32_1 = arith.constant 0 : i32
    return %arg0, %c0_i32, %c0_i32_0 : i32, i32, i32
  }
}

</mosaic_0001>

<llo_original>
// kernel: tpu_custom_call.1
$region0: #{tpu_custom_call.1}
  #allocation0 [shape = 'u32[]', space=smem, size = 0x4, offset = 0x4, fixed_abs, tag = 'smem constant byte address 0x4 - core index']
  #allocation1 [shape = 'u32[144,128]{1,0:T(1,128)}', space=vmem, size = 0x12000, scoped, tag = 'internal scratch']
  #allocation2 [shape = 'bf16[18,32]{1,0:T(8,128)(2,1)}', space=vmem, size = 0x1800, scoped, tag = 'scratch operand']
  #allocation3 [shape = 'bf16[16,96]{1,0:T(8,128)(2,1)}', space=vmem, size = 0x1000, scoped, tag = 'scratch operand']
  %s0 = inlined_call_operand.vmem [shape: f32[2,32,16], index: 0, kind: input, shape index: {}]
  %s1 = inlined_call_operand.vmem [shape: f32[2,1,16], index: 1, kind: input, shape index: {}]
  %s2 = inlined_call_operand.vmem [shape: bf16[3,96,32], index: 2, kind: input, shape index: {}]
  %s3 = inlined_call_operand.vmem [shape: f32[3,1,32], index: 3, kind: input, shape index: {}]
  %s4 = inlined_call_operand.vmem [shape: f32[3,1,32], index: 4, kind: input, shape index: {}]
  %s5 = inlined_call_operand.vmem [shape: f32[3,1,32], index: 5, kind: input, shape index: {}]
  %s6 = inlined_call_operand.vmem [shape: bf16[32,4], index: 6, kind: input, shape index: {}]
  %s7 = inlined_call_operand.vmem [shape: f32[1,4], index: 7, kind: input, shape index: {}]
  %s8 = inlined_call_operand.hbm [shape: f32[2,4,16], index: 8, kind: output, shape index: {}]
  %s9 = sld [smem:[#allocation0]]
  $region65: #{tpu_custom_call.1} parent=0
    _
  %s11 = ssub.s32 1, %s9
  %s12 = scalar_select 0, %s11, %s9
  $region1: #{tpu_custom_call.1} parent=0
    #allocation4 [shape = 'u8[4096]{0}', space=vmem, size = 0x1000, scoped, tag = 'output window, operand 0']
    #allocation5 [shape = 's32[2]{0}', space=sflag, size = 0x8, scoped, tag = 'scoped memory for tpu_custom_call.1']
    %13 = vsyncpa [#allocation5], 0
    %s14 = scalar_lea.sflag [#allocation5], 1
    %15 = vsyncpa %s14, 0
    loop: start=0, step=1, limit=4
    $region2: #{tpu_custom_call.1} parent=1 // loop_pre_header
      _
    $region3: #{tpu_custom_call.1} parent=1 // loop_header
      %s17 = sphi 0, %s21
      %p18 = scmp.ge.s32.totalorder %s17, 4
      %s27 = sphi 0, %s29
      %s30 = sphi 0, %s27
      %s31 = sphi 0, %s30
      %s47 = sphi 0, %s31
      %s53 = sphi 0, %s55
      %s56 = sphi 0, %s53
      %s57 = sphi 0, %s56
      %s73 = sphi 0, %s57
      %s77 = sphi 0, %s77
      %s79 = sphi 0, %s77
      %s80 = sphi 0, %s79
      %s94 = sphi 0, %s80
      %s98 = sphi 0, %s98
      %s100 = sphi 0, %s98
      %s101 = sphi 0, %s100
      %s115 = sphi 0, %s101
      %s119 = sphi 0, %s119
      %s121 = sphi 0, %s119
      %s122 = sphi 0, %s121
      %s136 = sphi 0, %s122
      %s140 = sphi 0, %s140
      %s142 = sphi 0, %s140
      %s143 = sphi 0, %s142
      %s157 = sphi 0, %s143
      %s161 = sphi 0, %s161
      %s163 = sphi 0, %s161
      %s164 = sphi 0, %s163
      %s178 = sphi 0, %s164
      %s182 = sphi 0, %s182
      %s184 = sphi 0, %s182
      %s185 = sphi 0, %s184
      %s199 = sphi 0, %s185
      %s205 = sphi 0, %s207
      %s208 = sphi 0, %s205
      %s209 = sphi 0, %s208
      %s225 = sphi 0, %s209
    $region4: #{tpu_custom_call.1} parent=1 // loop_header_branch
      %20 = sbr.rel (%p18) target = $region8
    $region5: #{tpu_custom_call.1} parent=1 // loop_body
      %s22 = ssub.s32 %s17, 1
      %s23 = ssub.s32 %s17, 2
      %s24 = sadd.s32 %s17, 1
      %s25 = ssub.s32 %s17, %s24
      %p26 = scmp.eq.s32.totalorder %s25, 0
      %s28 = sadd.s32 %s27, 1
      %s29 = scalar_select %p26, %s27, %s28
      %p32 = pneg %p26
      %p33 = scmp.eq.s32.totalorder %s17, 1
      %p34 = por %p32, %p33
      %p35 = scmp.ne.s32.totalorder %s27, %s30
      %p36 = scmp.eq.s32.totalorder %s17, 0
      %p37 = por %p35, %p36
      %p38 = scmp.ne.s32.totalorder %s27, %s30
      %p39 = scmp.eq.s32.totalorder %s22, 1
      %p40 = por %p38, %p39
      %p41 = scmp.ne.s32.totalorder %s30, %s31
      %p42 = scmp.eq.s32.totalorder %s22, 0
      %p43 = por %p41, %p42
      %p44 = scmp.ne.s32.totalorder %s30, %s31
      %p45 = scmp.eq.s32.totalorder %s23, 1
      %p46 = por %p44, %p45
      %p48 = scmp.ne.s32.totalorder %s31, %s47
      %p49 = scmp.eq.s32.totalorder %s23, 0
      %p50 = por %p48, %p49
      %s51 = ssub.s32 %s17, %s24
      %p52 = scmp.eq.s32.totalorder %s51, 0
      %s54 = sadd.s32 %s53, 1
      %s55 = scalar_select %p52, %s53, %s54
      %p58 = pneg %p52
      %p59 = scmp.eq.s32.totalorder %s17, 1
      %p60 = por %p58, %p59
      %p61 = scmp.ne.s32.totalorder %s53, %s56
      %p62 = scmp.eq.s32.totalorder %s17, 0
      %p63 = por %p61, %p62
      %p64 = scmp.ne.s32.totalorder %s53, %s56
      %p65 = scmp.eq.s32.totalorder %s22, 1
      %p66 = por %p64, %p65
      %p67 = scmp.ne.s32.totalorder %s56, %s57
      %p68 = scmp.eq.s32.totalorder %s22, 0
      %p69 = por %p67, %p68
      %p70 = scmp.ne.s32.totalorder %s56, %s57
      %p71 = scmp.eq.s32.totalorder %s23, 1
      %p72 = por %p70, %p71
      %p74 = scmp.ne.s32.totalorder %s57, %s73
      %p75 = scmp.eq.s32.totalorder %s23, 0
      %p76 = por %p74, %p75
      %s78 = sadd.s32 %s77, 1
      %p81 = scmp.eq.s32.totalorder %s17, 1
      %p82 = scmp.ne.s32.totalorder %s77, %s79
      %p83 = scmp.eq.s32.totalorder %s17, 0
      %p84 = por %p82, %p83
      %p85 = scmp.ne.s32.totalorder %s77, %s79
      %p86 = scmp.eq.s32.totalorder %s22, 1
      %p87 = por %p85, %p86
      %p88 = scmp.ne.s32.totalorder %s79, %s80
      %p89 = scmp.eq.s32.totalorder %s22, 0
      %p90 = por %p88, %p89
      %p91 = scmp.ne.s32.totalorder %s79, %s80
      %p92 = scmp.eq.s32.totalorder %s23, 1
      %p93 = por %p91, %p92
      %p95 = scmp.ne.s32.totalorder %s80, %s94
      %p96 = scmp.eq.s32.totalorder %s23, 0
      %p97 = por %p95, %p96
      %s99 = sadd.s32 %s98, 1
      %p102 = scmp.eq.s32.totalorder %s17, 1
      %p103 = scmp.ne.s32.totalorder %s98, %s100
      %p104 = scmp.eq.s32.totalorder %s17, 0
      %p105 = por %p103, %p104
      %p106 = scmp.ne.s32.totalorder %s98, %s100
      %p107 = scmp.eq.s32.totalorder %s22, 1
      %p108 = por %p106, %p107
      %p109 = scmp.ne.s32.totalorder %s100, %s101
      %p110 = scmp.eq.s32.totalorder %s22, 0
      %p111 = por %p109, %p110
      %p112 = scmp.ne.s32.totalorder %s100, %s101
      %p113 = scmp.eq.s32.totalorder %s23, 1
      %p114 = por %p112, %p113
      %p116 = scmp.ne.s32.totalorder %s101, %s115
      %p117 = scmp.eq.s32.totalorder %s23, 0
      %p118 = por %p116, %p117
      %s120 = sadd.s32 %s119, 1
      %p123 = scmp.eq.s32.totalorder %s17, 1
      %p124 = scmp.ne.s32.totalorder %s119, %s121
      %p125 = scmp.eq.s32.totalorder %s17, 0
      %p126 = por %p124, %p125
      %p127 = scmp.ne.s32.totalorder %s119, %s121
      %p128 = scmp.eq.s32.totalorder %s22, 1
      %p129 = por %p127, %p128
      %p130 = scmp.ne.s32.totalorder %s121, %s122
      %p131 = scmp.eq.s32.totalorder %s22, 0
      %p132 = por %p130, %p131
      %p133 = scmp.ne.s32.totalorder %s121, %s122
      %p134 = scmp.eq.s32.totalorder %s23, 1
      %p135 = por %p133, %p134
      %p137 = scmp.ne.s32.totalorder %s122, %s136
      %p138 = scmp.eq.s32.totalorder %s23, 0
      %p139 = por %p137, %p138
      %s141 = sadd.s32 %s140, 1
      %p144 = scmp.eq.s32.totalorder %s17, 1
      %p145 = scmp.ne.s32.totalorder %s140, %s142
      %p146 = scmp.eq.s32.totalorder %s17, 0
      %p147 = por %p145, %p146
      %p148 = scmp.ne.s32.totalorder %s140, %s142
      %p149 = scmp.eq.s32.totalorder %s22, 1
      %p150 = por %p148, %p149
      %p151 = scmp.ne.s32.totalorder %s142, %s143
      %p152 = scmp.eq.s32.totalorder %s22, 0
      %p153 = por %p151, %p152
      %p154 = scmp.ne.s32.totalorder %s142, %s143
      %p155 = scmp.eq.s32.totalorder %s23, 1
      %p156 = por %p154, %p155
      %p158 = scmp.ne.s32.totalorder %s143, %s157
      %p159 = scmp.eq.s32.totalorder %s23, 0
      %p160 = por %p158, %p159
      %s162 = sadd.s32 %s161, 1
      %p165 = scmp.eq.s32.totalorder %s17, 1
      %p166 = scmp.ne.s32.totalorder %s161, %s163
      %p167 = scmp.eq.s32.totalorder %s17, 0
      %p168 = por %p166, %p167
      %p169 = scmp.ne.s32.totalorder %s161, %s163
      %p170 = scmp.eq.s32.totalorder %s22, 1
      %p171 = por %p169, %p170
      %p172 = scmp.ne.s32.totalorder %s163, %s164
      %p173 = scmp.eq.s32.totalorder %s22, 0
      %p174 = por %p172, %p173
      %p175 = scmp.ne.s32.totalorder %s163, %s164
      %p176 = scmp.eq.s32.totalorder %s23, 1
      %p177 = por %p175, %p176
      %p179 = scmp.ne.s32.totalorder %s164, %s178
      %p180 = scmp.eq.s32.totalorder %s23, 0
      %p181 = por %p179, %p180
      %s183 = sadd.s32 %s182, 1
      %p186 = scmp.eq.s32.totalorder %s17, 1
      %p187 = scmp.ne.s32.totalorder %s182, %s184
      %p188 = scmp.eq.s32.totalorder %s17, 0
      %p189 = por %p187, %p188
      %p190 = scmp.ne.s32.totalorder %s182, %s184
      %p191 = scmp.eq.s32.totalorder %s22, 1
      %p192 = por %p190, %p191
      %p193 = scmp.ne.s32.totalorder %s184, %s185
      %p194 = scmp.eq.s32.totalorder %s22, 0
      %p195 = por %p193, %p194
      %p196 = scmp.ne.s32.totalorder %s184, %s185
      %p197 = scmp.eq.s32.totalorder %s23, 1
      %p198 = por %p196, %p197
      %p200 = scmp.ne.s32.totalorder %s185, %s199
      %p201 = scmp.eq.s32.totalorder %s23, 0
      %p202 = por %p200, %p201
      %s203 = ssub.s32 %s17, %s24
      %p204 = scmp.eq.s32.totalorder %s203, 0
      %s206 = sadd.s32 %s205, 1
      %s207 = scalar_select %p204, %s205, %s206
      %p210 = pneg %p204
      %p211 = scmp.eq.s32.totalorder %s17, 1
      %p212 = por %p210, %p211
      %p213 = scmp.ne.s32.totalorder %s205, %s208
      %p214 = scmp.eq.s32.totalorder %s17, 0
      %p215 = por %p213, %p214
      %p216 = scmp.ne.s32.totalorder %s205, %s208
      %p217 = scmp.eq.s32.totalorder %s22, 1
      %p218 = por %p216, %p217
      %p219 = scmp.ne.s32.totalorder %s208, %s209
      %p220 = scmp.eq.s32.totalorder %s22, 0
      %p221 = por %p219, %p220
      %p222 = scmp.ne.s32.totalorder %s208, %s209
      %p223 = scmp.eq.s32.totalorder %s23, 1
      %p224 = por %p222, %p223
      %p226 = scmp.ne.s32.totalorder %s209, %s225
      %p227 = scmp.eq.s32.totalorder %s23, 0
      %p228 = por %p226, %p227
      %p229 = scmp.le.s32.totalorder 1, %s17
      %p230 = scmp.lt.s32.totalorder %s17, 3
      %p231 = pnand %p229, %p230
      %p232 = pneg %p231
      // Predicated region
      $region9: #{tpu_custom_call.1} parent=5 // pred_check
        _
      $region10: #{tpu_custom_call.1} parent=5 // pred_check_branch
        %234 = sbr.rel (%p231) target = $region12
      $region11: #{tpu_custom_call.1} parent=5 // pred_region
        %s235 = ssub.s32 %s17, 1
        // Predicated region
        $region13: #{tpu_custom_call.1} parent=11 // pred_check
          %p236 = pneg %p90
        $region14: #{tpu_custom_call.1} parent=11 // pred_check_branch
          %238 = sbr.rel (%p236) target = $region16
        $region15: #{tpu_custom_call.1} parent=11 // pred_region
          _
        $region16: #{tpu_custom_call.1} parent=11 // pred_fallthru
          _
        // Predicated region
        $region17: #{tpu_custom_call.1} parent=11 // pred_check
          %p239 = pneg %p111
        $region18: #{tpu_custom_call.1} parent=11 // pred_check_branch
          %241 = sbr.rel (%p239) target = $region20
        $region19: #{tpu_custom_call.1} parent=11 // pred_region
          _
        $region20: #{tpu_custom_call.1} parent=11 // pred_fallthru
          _
        // Predicated region
        $region21: #{tpu_custom_call.1} parent=11 // pred_check
          %p242 = pneg %p132
        $region22: #{tpu_custom_call.1} parent=11 // pred_check_branch
          %244 = sbr.rel (%p242) target = $region24
        $region23: #{tpu_custom_call.1} parent=11 // pred_region
          _
        $region24: #{tpu_custom_call.1} parent=11 // pred_fallthru
          _
        // Predicated region
        $region25: #{tpu_custom_call.1} parent=11 // pred_check
          %p245 = pneg %p153
        $region26: #{tpu_custom_call.1} parent=11 // pred_check_branch
          %247 = sbr.rel (%p245) target = $region28
        $region27: #{tpu_custom_call.1} parent=11 // pred_region
          _
        $region28: #{tpu_custom_call.1} parent=11 // pred_fallthru
          _
        // Predicated region
        $region29: #{tpu_custom_call.1} parent=11 // pred_check
          %p248 = pneg %p174
        $region30: #{tpu_custom_call.1} parent=11 // pred_check_branch
          %250 = sbr.rel (%p248) target = $region32
        $region31: #{tpu_custom_call.1} parent=11 // pred_region
          _
        $region32: #{tpu_custom_call.1} parent=11 // pred_fallthru
          _
        // Predicated region
        $region33: #{tpu_custom_call.1} parent=11 // pred_check
          %p251 = pneg %p195
        $region34: #{tpu_custom_call.1} parent=11 // pred_check_branch
          %253 = sbr.rel (%p251) target = $region36
        $region35: #{tpu_custom_call.1} parent=11 // pred_region
          _
        $region36: #{tpu_custom_call.1} parent=11 // pred_fallthru
          _
      $region12: #{tpu_custom_call.1} parent=5 // pred_fallthru
        _
      %p254 = scmp.lt.s32.totalorder %s17, 2
      // Predicated region
      $region37: #{tpu_custom_call.1} parent=5 // pred_check
        %p255 = pneg %p254
      $region38: #{tpu_custom_call.1} parent=5 // pred_check_branch
        %257 = sbr.rel (%p255) target = $region40
      $region39: #{tpu_custom_call.1} parent=5 // pred_region
        // Predicated region
        $region41: #{tpu_custom_call.1} parent=39 // pred_check
          %p258 = pneg %p37
        $region42: #{tpu_custom_call.1} parent=39 // pred_check_branch
          %260 = sbr.rel (%p258) target = $region44
        $region43: #{tpu_custom_call.1} parent=39 // pred_region
          %p261 = scmp.lt.s32.totalorder %s17, 1
          %s262 = scalar_select %p261, %s17, 1
          %s263 = smul.addr %s262, 4
          %s264 = smul.addr %s263, 8
          %s265 = scalar_lea.vmem %s0, %s264
        $region44: #{tpu_custom_call.1} parent=39 // pred_fallthru
          _
        // Predicated region
        $region45: #{tpu_custom_call.1} parent=39 // pred_check
          %p266 = pneg %p63
        $region46: #{tpu_custom_call.1} parent=39 // pred_check_branch
          %268 = sbr.rel (%p266) target = $region48
        $region47: #{tpu_custom_call.1} parent=39 // pred_region
          %p269 = scmp.lt.s32.totalorder %s17, 1
          %s270 = scalar_select %p269, %s17, 1
          %s271 = scalar_lea.vmem %s1, %s270
        $region48: #{tpu_custom_call.1} parent=39 // pred_fallthru
          _
      $region40: #{tpu_custom_call.1} parent=5 // pred_fallthru
        _
      %p272 = scmp.le.s32.totalorder 1, %s17
      %p273 = scmp.lt.s32.totalorder %s17, 3
      %p274 = pnand %p272, %p273
      %p275 = pneg %p274
      // Predicated region
      $region49: #{tpu_custom_call.1} parent=5 // pred_check
        _
      $region50: #{tpu_custom_call.1} parent=5 // pred_check_branch
        %277 = sbr.rel (%p274) target = $region52
      $region51: #{tpu_custom_call.1} parent=5 // pred_region
        %s278 = ssub.s32 %s17, 1
        %p279 = scmp.lt.s32.totalorder %s22, 1
        %s280 = scalar_select %p279, %s22, 1
        %s281 = smul.addr %s280, 4
        %s282 = smul.addr %s281, 8
        %s283 = scalar_lea.vmem %s0, %s282
        %p284 = pneg %p43
        %p285 = pneg %p40
        %p286 = scmp.lt.s32.totalorder %s22, 1
        %s287 = scalar_select %p286, %s22, 1
        %s288 = scalar_lea.vmem %s1, %s287
        %p289 = pneg %p69
        %p290 = pneg %p66
        %p291 = pneg %p90
        %p292 = pneg %p87
        %p293 = pneg %p111
        %p294 = pneg %p108
        %p295 = pneg %p132
        %p296 = pneg %p129
        %p297 = pneg %p153
        %p298 = pneg %p150
        %p299 = pneg %p174
        %p300 = pneg %p171
        %p301 = pneg %p195
        %p302 = pneg %p192
        %p303 = pneg %p221
        %p304 = pneg %p218
        %s305 = sand.u32 %s208, 1
        %s306 = scalar_lea.sflag [#allocation5], %s305
        %s307 = sand.u32 %s208, 1
        %s308 = smul.addr %s307, 4
        %s309 = scalar_lea.vmem [#allocation4], %s308
        %p310 = scmp.lt.s32.totalorder %s22, 1
        %s311 = scalar_select %p310, %s22, 1
        %s312 = smul.addr %s311, 4
        %s313 = smul.addr %s312, 8
        %s314 = scalar_lea.vmem %s0, %s313
        %p315 = scmp.lt.s32.totalorder %s22, 1
        %s316 = scalar_select %p315, %s22, 1
        %s317 = scalar_lea.vmem %s1, %s316
        %v319 = vld [vmem:[%s314] sm:$0xff]
        %v320 = vld [vmem:[%s314 + $0x8] sm:$0xff]
        %v321 = vld [vmem:[%s314 + $0x10] sm:$0xff]
        %v322 = vld [vmem:[%s314 + $0x18] sm:$0xff]
        %v323 = vld [vmem:[%s317] sm:$0x1]
        %324 = vxpose.xlu0.b32.start [1/16] %v323, 128
        %325 = vxpose.xlu0.b32.cont [2/16] 0.0, 128
        %326 = vxpose.xlu0.b32.cont [3/16] 0.0, 128
        %327 = vxpose.xlu0.b32.cont [4/16] 0.0, 128
        %328 = vxpose.xlu0.b32.cont [5/16] 0.0, 128
        %329 = vxpose.xlu0.b32.cont [6/16] 0.0, 128
        %330 = vxpose.xlu0.b32.cont [7/16] 0.0, 128
        %331 = vxpose.xlu0.b32.cont [8/16] 0.0, 128
        %332 = vxpose.xlu0.b32.cont [9/16] 0.0, 128
        %333 = vxpose.xlu0.b32.cont [10/16] 0.0, 128
        %334 = vxpose.xlu0.b32.cont [11/16] 0.0, 128
        %335 = vxpose.xlu0.b32.cont [12/16] 0.0, 128
        %336 = vxpose.xlu0.b32.cont [13/16] 0.0, 128
        %337 = vxpose.xlu0.b32.cont [14/16] 0.0, 128
        %338 = vxpose.xlu0.b32.cont [15/16] 0.0, 128
        %339 = vxpose.xlu0.b32.end [16/16] 0.0, 128
        %v340 = vpop.trf.xlu0
        %v341 = vpop.trf.xlu0
        %v342 = vpop.trf.xlu0
        %v343 = vpop.trf.xlu0
        %v344 = vpop.trf.xlu0
        %v345 = vpop.trf.xlu0
        %v346 = vpop.trf.xlu0
        %v347 = vpop.trf.xlu0
        %v348 = vpop.trf.xlu0
        %v349 = vpop.trf.xlu0
        %v350 = vpop.trf.xlu0
        %v351 = vpop.trf.xlu0
        %v352 = vpop.trf.xlu0
        %v353 = vpop.trf.xlu0
        %v354 = vpop.trf.xlu0
        %v355 = vpop.trf.xlu0
        %vm356 = vcmask 253952
        %vm357 = vsmask.f32 256
        %vm358 = vmand %vm356, %vm357
        %v359 = vld [vmem:[#allocation2] sm:$0x1]
        %v360 = vsel %vm358, 0, %v359
        %361 = vst [vmem:[#allocation2] sm:$0x1] %v360
        %vm362 = vsmask.f32 7938
        %vm363 = vmand %vm356, %vm362
        %v364 = vld [vmem:[#allocation2 + $0x8] sm:$0x1]
        %v365 = vsel %vm363, 0, %v364
        %366 = vst [vmem:[#allocation2 + $0x8] sm:$0x1] %v365
        %v368 = vlaneseq
        %v369 = vshrl.u32 %v368, 7
        %v370 = vsub.s32 0, %v369
        %v371 = vrot.slane %v323, %v370
        %v373 = vmul.f32 %v319, %v371
        %v374 = vmul.f32 %v320, %v371
        %v375 = vmul.f32 %v321, %v371
        %v376 = vmul.f32 %v322, %v371
        %377 = vxpose.xlu0.b32.start [1/16] %v373, 128
        %378 = vxpose.xlu0.b32.cont [2/16] %v374, 128
        %379 = vxpose.xlu0.b32.cont [3/16] %v375, 128
        %380 = vxpose.xlu0.b32.cont [4/16] %v376, 128
        %381 = vxpose.xlu0.b32.cont [5/16] 0.0, 128
        %382 = vxpose.xlu0.b32.cont [6/16] 0.0, 128
        %383 = vxpose.xlu0.b32.cont [7/16] 0.0, 128
        %384 = vxpose.xlu0.b32.cont [8/16] 0.0, 128
        %385 = vxpose.xlu0.b32.cont [9/16] 0.0, 128
        %386 = vxpose.xlu0.b32.cont [10/16] 0.0, 128
        %387 = vxpose.xlu0.b32.cont [11/16] 0.0, 128
        %388 = vxpose.xlu0.b32.cont [12/16] 0.0, 128
        %389 = vxpose.xlu0.b32.cont [13/16] 0.0, 128
        %390 = vxpose.xlu0.b32.cont [14/16] 0.0, 128
        %391 = vxpose.xlu0.b32.cont [15/16] 0.0, 128
        %392 = vxpose.xlu0.b32.end [16/16] 0.0, 128
        %v393 = vpop.trf.xlu0
        %v394 = vpop.trf.xlu0
        %v395 = vpop.trf.xlu0
        %v396 = vpop.trf.xlu0
        %v397 = vpop.trf.xlu0
        %v398 = vpop.trf.xlu0
        %v399 = vpop.trf.xlu0
        %v400 = vpop.trf.xlu0
        %v401 = vpop.trf.xlu0
        %v402 = vpop.trf.xlu0
        %v403 = vpop.trf.xlu0
        %v404 = vpop.trf.xlu0
        %v405 = vpop.trf.xlu0
        %v406 = vpop.trf.xlu0
        %v407 = vpop.trf.xlu0
        %v408 = vpop.trf.xlu0
        %v409 = vpack.c.bf16 %v394, %v393
        %v411 = vunpack.c.l.b16 %v409
        %v412 = vunpack.c.h.b16 %v409
        %v413 = vpack.c.b16 %v411, %v411
        %v414 = vpack.c.b16 %v412, %v412
        %vm415 = vsmask.f32 4368
        %vm416 = vmor %vm357, %vm415
        %v418 = vshrl.u32 %v413, 16
        %v420 = vrot.slane %v418, 7
        %v421 = vshll.u32 %v413, 16
        %v423 = vor.u32 %v420, %v421
        %v424 = vrot.slane %v420, 4
        %v426 = vshrl.u32 %v414, 16
        %v428 = vrot.slane %v426, 7
        %v429 = vshll.u32 %v414, 16
        %v431 = vor.u32 %v428, %v429
        %v432 = vsel %vm416, %v424, %v431
        %v433 = vrot.slane %v428, 4
        %vm437 = vcmask 257024
        %vm438 = vmand %vm437, %vm362
        %v439 = vld [vmem:[#allocation2] sm:$0xf]
        %v440 = vsel %vm438, %v423, %v439
        %441 = vst [vmem:[#allocation2] sm:$0xf] %v440
        %vm442 = vcmask 257024
        %443 = vst.msk [vmem:[#allocation2 + $0x4] sm:$0xf] %vm442, %v432
        %v444 = vld [vmem:[#allocation2 + $0x8] sm:$0x1]
        %v445 = vsel %vm358, %v433, %v444
        %446 = vst [vmem:[#allocation2 + $0x8] sm:$0x1] %v445
        %v447 = vld [vmem:[#allocation2] sm:$0xf]
        %v448 = vld [vmem:[#allocation2 + $0x4] sm:$0xf]
        %449 = vst.msk [vmem:[#allocation3] sm:$0xf] %vm442, %v447
        %450 = vst.msk [vmem:[#allocation3 + $0x4] sm:$0xf] %vm442, %v448
        %v451 = vld [vmem:[#allocation2] sm:$0xf]
        %v452 = vld [vmem:[#allocation2 + $0x4] sm:$0xf]
        %v453 = vld [vmem:[#allocation2 + $0x8] sm:$0x1]
        %vm454 = vsmask.f32 3328
        %vm455 = vsmask.f32 7440
        %vm456 = vmor %vm454, %vm455
        %v458 = vshrl.u32 %v451, 16
        %v460 = vrot.slane %v458, 4
        %v461 = vshll.u32 %v451, 16
        %v463 = vrot.slane %v461, 5
        %v464 = vor.u32 %v460, %v463
        %v465 = vrot.slane %v464, 4
        %v467 = vshll.u32 %v452, 16
        %v469 = vrot.slane %v467, 5
        %v470 = vsel %vm456, %v465, %v469
        %v471 = vshrl.u32 %v452, 16
        %v473 = vrot.slane %v471, 4
        %v474 = vor.u32 %v473, %v469
        %v475 = vrot.slane %v474, 4
        %v477 = vshll.u32 %v453, 16
        %v479 = vrot.slane %v477, 5
        %v480 = vsel %vm456, %v475, %v479
        %481 = vrot.lane.b32.xlu0 %v470, 32
        %v482 = vpop.permute.xlu0 %481
        %483 = vrot.lane.b32.xlu0 %v480, 32
        %v484 = vpop.permute.xlu0 %483
        %vm487 = vcmask 519424
        %488 = vst.msk [vmem:[#allocation3] sm:$0xf] %vm487, %v482
        %489 = vst.msk [vmem:[#allocation3 + $0x4] sm:$0xf] %vm487, %v484
        %v490 = vld [vmem:[#allocation2] sm:$0xe]
        %v491 = vld [vmem:[#allocation2 + $0x4] sm:$0xf]
        %v492 = vld [vmem:[#allocation2 + $0x8] sm:$0x1]
        %vm496 = vcmask 1042432
        %vm497 = vcmask 1046532
        %vm498 = vmor %vm496, %vm497
        %v499 = vrot.slane %v490, 5
        %v500 = vrot.slane %v499, 4
        %v501 = vrot.slane %v491, 5
        %v502 = vsel %vm498, %v500, %v501
        %v503 = vrot.slane %v501, 4
        %v504 = vrot.slane %v492, 5
        %v505 = vsel %vm498, %v503, %v504
        %506 = vrot.lane.b32.xlu0 %v502, 64
        %v507 = vpop.permute.xlu0 %506
        %508 = vrot.lane.b32.xlu0 %v505, 64
        %v509 = vpop.permute.xlu0 %508
        %vm512 = vcmask 781824
        %513 = vst.msk [vmem:[#allocation3] sm:$0xf] %vm512, %v507
        %514 = vst.msk [vmem:[#allocation3 + $0x4] sm:$0xf] %vm512, %v509
        %v515 = vld [vmem:[#allocation3] sm:$0xf]
        %v516 = vld [vmem:[#allocation3 + $0x4] sm:$0xf]
        %v517 = vld [vmem:[%s2] sm:$0xf]
        %v518 = vld [vmem:[%s2 + $0x4] sm:$0xf]
        %v519 = vld [vmem:[%s2 + $0x8] sm:$0xf]
        %v520 = vld [vmem:[%s2 + $0xc] sm:$0xf]
        %v521 = vld [vmem:[%s2 + $0x10] sm:$0xf]
        %v522 = vld [vmem:[%s2 + $0x14] sm:$0xf]
        %v523 = vld [vmem:[%s2 + $0x18] sm:$0xf]
        %v524 = vld [vmem:[%s2 + $0x1c] sm:$0xf]
        %v525 = vld [vmem:[%s2 + $0x20] sm:$0xf]
        %v526 = vld [vmem:[%s2 + $0x24] sm:$0xf]
        %v527 = vld [vmem:[%s2 + $0x28] sm:$0xf]
        %v528 = vld [vmem:[%s2 + $0x2c] sm:$0xf]
        %v529 = vld [vmem:[%s3] sm:$0x1]
        %v531 = vlaneseq
        %v532 = vshrl.u32 %v531, 7
        %v533 = vsub.s32 0, %v532
        %v534 = vrot.slane %v529, %v533
        %v538 = vunpack.c.l.b16 %v515
        %v539 = vunpack.c.l.b16 %v516
        %v540 = vpack.c.b16 %v539, %v538
        %v553 = vunpack.c.l.b16 %v517
        %v554 = vunpack.c.l.b16 %v518
        %v555 = vunpack.c.l.b16 %v519
        %v556 = vunpack.c.l.b16 %v520
        %v557 = vunpack.c.l.b16 %v521
        %v558 = vunpack.c.l.b16 %v522
        %v559 = vunpack.c.l.b16 %v523
        %v560 = vunpack.c.l.b16 %v524
        %v561 = vunpack.c.l.b16 %v525
        %v562 = vunpack.c.l.b16 %v526
        %v563 = vunpack.c.l.b16 %v527
        %v564 = vunpack.c.l.b16 %v528
        %v565 = vpack.c.b16 %v554, %v553
        %v566 = vpack.c.b16 %v556, %v555
        %v567 = vpack.c.b16 %v558, %v557
        %v568 = vpack.c.b16 %v560, %v559
        %v569 = vpack.c.b16 %v562, %v561
        %v570 = vpack.c.b16 %v564, %v563
        %vm577 = vcmask 785408
        %v579 = vsel %vm577, %v540, 0
        %581 = vmatprep.subr.bf16.mxu0 0
        %582 = vmatpush1.bf16.msra.mxu0 0
        %583 = vmatprep.subr.bf16.mxu0 0
        %584 = vmatpush1.bf16.msra.mxu0 0
        %585 = vmatprep.subr.bf16.mxu0 0
        %586 = vmatpush1.bf16.msra.mxu0 %v570
        %587 = vmatprep.subr.bf16.mxu0 0
        %588 = vmatpush1.bf16.msra.mxu0 %v569
        %589 = vmatprep.subr.bf16.mxu0 0
        %590 = vmatpush1.bf16.msra.mxu0 %v568
        %591 = vmatprep.subr.bf16.mxu0 0
        %592 = vmatpush1.bf16.msra.mxu0 %v567
        %593 = vmatprep.subr.bf16.mxu0 0
        %594 = vmatpush1.bf16.msra.mxu0 %v566
        %595 = vmatprep.subr.bf16.mxu0 0
        %596 = vmatpush1.bf16.msra.mxu0 %v565
        %597 = vmatprep.subr.bf16.mxu0 0
        %598 = vmatpush2.bf16.msra.mxu0 0
        %599 = vmatprep.subr.bf16.mxu0 0
        %600 = vmatpush2.bf16.msra.mxu0 0
        %601 = vmatprep.subr.bf16.mxu0 0
        %602 = vmatpush2.bf16.msra.mxu0 0
        %603 = vmatprep.subr.bf16.mxu0 0
        %604 = vmatpush2.bf16.msra.mxu0 0
        %605 = vmatprep.subr.bf16.mxu0 0
        %606 = vmatpush2.bf16.msra.mxu0 0
        %607 = vmatprep.subr.bf16.mxu0 0
        %608 = vmatpush2.bf16.msra.mxu0 0
        %609 = vmatprep.subr.bf16.mxu0 0
        %610 = vmatpush2.bf16.msra.mxu0 0
        %611 = vmatprep.subr.bf16.mxu0 0
        %612 = vmatpush2.bf16.msra.mxu0 0
        %613 = vmatprep.mubr.bf16.mxu0 0
        %614 = vmatmul.mubr.bf16.gmra.mxu0 %v579
        %v615 = vpop.f32.mrf.mxu0
        %v616 = vadd.f32 %v534, %v615
        %v617 = vpop.f32.mrf.mxu0
        %v618 = vpop.f32.mrf.mxu0
        %v619 = vadd.f32 %v534, %v618
        %v620 = vpop.f32.mrf.mxu0
        %621 = vdwg.mxu0
        %vm622 = vcmask 261120
        %v623 = vsel %vm622, %v616, 0.0
        %624 = vadd.xlane.f32.xlu0 %v623
        %v625 = vpop.xlane.xlu0 %624
        %v626 = vsel %vm622, %v619, 0.0
        %627 = vadd.xlane.f32.xlu0 %v626
        %v628 = vpop.xlane.xlu0 %627
        %v629 = vrcp.pop 32.0
        %v630 = vmul.f32 %v625, %v629
        %v631 = vmul.f32 %v628, %v629
        %v632 = vmul.f32 %v616, %v616
        %v633 = vmul.f32 %v619, %v619
        %v634 = vsel %vm622, %v632, 0.0
        %635 = vadd.xlane.f32.xlu0 %v634
        %v636 = vpop.xlane.xlu0 %635
        %v637 = vsel %vm622, %v633, 0.0
        %638 = vadd.xlane.f32.xlu0 %v637
        %v639 = vpop.xlane.xlu0 %638
        %v640 = vmul.f32 %v636, %v629
        %v641 = vmul.f32 %v639, %v629
        %v642 = vmul.f32 %v630, %v630
        %v643 = vmul.f32 %v631, %v631
        %v644 = vsub.f32 %v640, %v642
        %v645 = vsub.f32 %v641, %v643
        %v646 = vmax.f32 %v644, 0.0
        %v647 = vmax.f32 %v645, 0.0
        %v648 = vsub.f32 %v616, %v630
        %v649 = vsub.f32 %v619, %v631
        %v650 = vadd.f32 %v646, 0.0001
        %v651 = vadd.f32 %v647, 0.0001
        %v652 = vrsqrt.pop %v650
        %v653 = vrsqrt.pop %v651
        %v654 = vmul.f32 %v648, %v652
        %v655 = vmul.f32 %v649, %v653
        %v656 = vld [vmem:[%s4] sm:$0x1]
        %v658 = vlaneseq
        %v659 = vshrl.u32 %v658, 7
        %v660 = vsub.s32 0, %v659
        %v661 = vrot.slane %v656, %v660
        %v663 = vmul.f32 %v654, %v661
        %v664 = vmul.f32 %v655, %v661
        %v665 = vld [vmem:[%s5] sm:$0x1]
        %v667 = vlaneseq
        %v668 = vshrl.u32 %v667, 7
        %v669 = vsub.s32 0, %v668
        %v670 = vrot.slane %v665, %v669
        %v672 = vadd.f32 %v663, %v670
        %v673 = vadd.f32 %v664, %v670
        %v674 = vmax.f32 %v672, 0.0
        %v675 = vmax.f32 %v673, 0.0
        %677 = vset.pattern.permute.xlu0 0
        %678 = vperm.xlu0 %677, %v340
        %v679 = vpop.permute.xlu0 %678
        %682 = vset.pattern.permute.xlu0 0
        %683 = vperm.xlu0 %682, %v341
        %v684 = vpop.permute.xlu0 %683
        %v686 = vmul.f32 %v674, %v679
        %v687 = vmul.f32 %v675, %v684
        %v688 = vpack.c.bf16 %v687, %v686
        %v690 = vunpack.c.l.b16 %v688
        %v691 = vunpack.c.h.b16 %v688
        %v692 = vpack.c.b16 %v690, %v690
        %v693 = vpack.c.b16 %v691, %v691
        %v695 = vshrl.u32 %v692, 16
        %v697 = vrot.slane %v695, 7
        %v698 = vshll.u32 %v692, 16
        %v700 = vor.u32 %v697, %v698
        %v701 = vrot.slane %v697, 4
        %v703 = vshrl.u32 %v693, 16
        %v705 = vrot.slane %v703, 7
        %v706 = vshll.u32 %v693, 16
        %v708 = vor.u32 %v705, %v706
        %v709 = vsel %vm416, %v701, %v708
        %v710 = vrot.slane %v705, 4
        %v714 = vld [vmem:[#allocation2] sm:$0xf]
        %v715 = vsel %vm438, %v700, %v714
        %716 = vst [vmem:[#allocation2] sm:$0xf] %v715
        %717 = vst.msk [vmem:[#allocation2 + $0x4] sm:$0xf] %vm442, %v709
        %v718 = vld [vmem:[#allocation2 + $0x8] sm:$0x1]
        %v719 = vsel %vm358, %v710, %v718
        %720 = vst [vmem:[#allocation2 + $0x8] sm:$0x1] %v719
        %v721 = vld [vmem:[#allocation2] sm:$0xf]
        %v722 = vld [vmem:[#allocation2 + $0x4] sm:$0xf]
        %723 = vst.msk [vmem:[#allocation3] sm:$0xf] %vm442, %v721
        %724 = vst.msk [vmem:[#allocation3 + $0x4] sm:$0xf] %vm442, %v722
        %v725 = vld [vmem:[#allocation2] sm:$0xf]
        %v726 = vld [vmem:[#allocation2 + $0x4] sm:$0xf]
        %v727 = vld [vmem:[#allocation2 + $0x8] sm:$0x1]
        %v729 = vshrl.u32 %v725, 16
        %v731 = vrot.slane %v729, 4
        %v732 = vshll.u32 %v725, 16
        %v734 = vrot.slane %v732, 5
        %v735 = vor.u32 %v731, %v734
        %v736 = vrot.slane %v735, 4
        %v738 = vshll.u32 %v726, 16
        %v740 = vrot.slane %v738, 5
        %v741 = vsel %vm456, %v736, %v740
        %v742 = vshrl.u32 %v726, 16
        %v744 = vrot.slane %v742, 4
        %v745 = vor.u32 %v744, %v740
        %v746 = vrot.slane %v745, 4
        %v748 = vshll.u32 %v727, 16
        %v750 = vrot.slane %v748, 5
        %v751 = vsel %vm456, %v746, %v750
        %752 = vrot.lane.b32.xlu0 %v741, 32
        %v753 = vpop.permute.xlu0 %752
        %754 = vrot.lane.b32.xlu0 %v751, 32
        %v755 = vpop.permute.xlu0 %754
        %758 = vst.msk [vmem:[#allocation3] sm:$0xf] %vm487, %v753
        %759 = vst.msk [vmem:[#allocation3 + $0x4] sm:$0xf] %vm487, %v755
        %v760 = vld [vmem:[#allocation2] sm:$0xe]
        %v761 = vld [vmem:[#allocation2 + $0x4] sm:$0xf]
        %v762 = vld [vmem:[#allocation2 + $0x8] sm:$0x1]
        %v766 = vrot.slane %v760, 5
        %v767 = vrot.slane %v766, 4
        %v768 = vrot.slane %v761, 5
        %v769 = vsel %vm498, %v767, %v768
        %v770 = vrot.slane %v768, 4
        %v771 = vrot.slane %v762, 5
        %v772 = vsel %vm498, %v770, %v771
        %773 = vrot.lane.b32.xlu0 %v769, 64
        %v774 = vpop.permute.xlu0 %773
        %775 = vrot.lane.b32.xlu0 %v772, 64
        %v776 = vpop.permute.xlu0 %775
        %779 = vst.msk [vmem:[#allocation3] sm:$0xf] %vm512, %v774
        %780 = vst.msk [vmem:[#allocation3 + $0x4] sm:$0xf] %vm512, %v776
        %v781 = vld [vmem:[#allocation3] sm:$0xf]
        %v782 = vld [vmem:[#allocation3 + $0x4] sm:$0xf]
        %s783 = scalar_lea.vmem %s2, 48
        %v784 = vld [vmem:[%s783] sm:$0xf]
        %v785 = vld [vmem:[%s783 + $0x4] sm:$0xf]
        %v786 = vld [vmem:[%s783 + $0x8] sm:$0xf]
        %v787 = vld [vmem:[%s783 + $0xc] sm:$0xf]
        %v788 = vld [vmem:[%s783 + $0x10] sm:$0xf]
        %v789 = vld [vmem:[%s783 + $0x14] sm:$0xf]
        %v790 = vld [vmem:[%s783 + $0x18] sm:$0xf]
        %v791 = vld [vmem:[%s783 + $0x1c] sm:$0xf]
        %v792 = vld [vmem:[%s783 + $0x20] sm:$0xf]
        %v793 = vld [vmem:[%s783 + $0x24] sm:$0xf]
        %v794 = vld [vmem:[%s783 + $0x28] sm:$0xf]
        %v795 = vld [vmem:[%s783 + $0x2c] sm:$0xf]
        %s796 = scalar_lea.vmem %s3, 1
        %v797 = vld [vmem:[%s796] sm:$0x1]
        %v799 = vlaneseq
        %v800 = vshrl.u32 %v799, 7
        %v801 = vsub.s32 0, %v800
        %v802 = vrot.slane %v797, %v801
        %v806 = vunpack.c.l.b16 %v781
        %v807 = vunpack.c.l.b16 %v782
        %v808 = vpack.c.b16 %v807, %v806
        %v821 = vunpack.c.l.b16 %v784
        %v822 = vunpack.c.l.b16 %v785
        %v823 = vunpack.c.l.b16 %v786
        %v824 = vunpack.c.l.b16 %v787
        %v825 = vunpack.c.l.b16 %v788
        %v826 = vunpack.c.l.b16 %v789
        %v827 = vunpack.c.l.b16 %v790
        %v828 = vunpack.c.l.b16 %v791
        %v829 = vunpack.c.l.b16 %v792
        %v830 = vunpack.c.l.b16 %v793
        %v831 = vunpack.c.l.b16 %v794
        %v832 = vunpack.c.l.b16 %v795
        %v833 = vpack.c.b16 %v822, %v821
        %v834 = vpack.c.b16 %v824, %v823
        %v835 = vpack.c.b16 %v826, %v825
        %v836 = vpack.c.b16 %v828, %v827
        %v837 = vpack.c.b16 %v830, %v829
        %v838 = vpack.c.b16 %v832, %v831
        %v846 = vsel %vm577, %v808, 0
        %848 = vmatprep.subr.bf16.mxu0 0
        %849 = vmatpush1.bf16.msra.mxu0 0
        %850 = vmatprep.subr.bf16.mxu0 0
        %851 = vmatpush1.bf16.msra.mxu0 0
        %852 = vmatprep.subr.bf16.mxu0 0
        %853 = vmatpush1.bf16.msra.mxu0 %v838
        %854 = vmatprep.subr.bf16.mxu0 0
        %855 = vmatpush1.bf16.msra.mxu0 %v837
        %856 = vmatprep.subr.bf16.mxu0 0
        %857 = vmatpush1.bf16.msra.mxu0 %v836
        %858 = vmatprep.subr.bf16.mxu0 0
        %859 = vmatpush1.bf16.msra.mxu0 %v835
        %860 = vmatprep.subr.bf16.mxu0 0
        %861 = vmatpush1.bf16.msra.mxu0 %v834
        %862 = vmatprep.subr.bf16.mxu0 0
        %863 = vmatpush1.bf16.msra.mxu0 %v833
        %864 = vmatprep.subr.bf16.mxu0 0
        %865 = vmatpush2.bf16.msra.mxu0 0
        %866 = vmatprep.subr.bf16.mxu0 0
        %867 = vmatpush2.bf16.msra.mxu0 0
        %868 = vmatprep.subr.bf16.mxu0 0
        %869 = vmatpush2.bf16.msra.mxu0 0
        %870 = vmatprep.subr.bf16.mxu0 0
        %871 = vmatpush2.bf16.msra.mxu0 0
        %872 = vmatprep.subr.bf16.mxu0 0
        %873 = vmatpush2.bf16.msra.mxu0 0
        %874 = vmatprep.subr.bf16.mxu0 0
        %875 = vmatpush2.bf16.msra.mxu0 0
        %876 = vmatprep.subr.bf16.mxu0 0
        %877 = vmatpush2.bf16.msra.mxu0 0
        %878 = vmatprep.subr.bf16.mxu0 0
        %879 = vmatpush2.bf16.msra.mxu0 0
        %880 = vmatprep.mubr.bf16.mxu0 0
        %881 = vmatmul.mubr.bf16.gmra.mxu0 %v846
        %v882 = vpop.f32.mrf.mxu0
        %v883 = vadd.f32 %v802, %v882
        %v884 = vpop.f32.mrf.mxu0
        %v885 = vpop.f32.mrf.mxu0
        %v886 = vadd.f32 %v802, %v885
        %v887 = vpop.f32.mrf.mxu0
        %888 = vdwg.mxu0
        %v889 = vsel %vm622, %v883, 0.0
        %890 = vadd.xlane.f32.xlu0 %v889
        %v891 = vpop.xlane.xlu0 %890
        %v892 = vsel %vm622, %v886, 0.0
        %893 = vadd.xlane.f32.xlu0 %v892
        %v894 = vpop.xlane.xlu0 %893
        %v895 = vmul.f32 %v891, %v629
        %v896 = vmul.f32 %v894, %v629
        %v897 = vmul.f32 %v883, %v883
        %v898 = vmul.f32 %v886, %v886
        %v899 = vsel %vm622, %v897, 0.0
        %900 = vadd.xlane.f32.xlu0 %v899
        %v901 = vpop.xlane.xlu0 %900
        %v902 = vsel %vm622, %v898, 0.0
        %903 = vadd.xlane.f32.xlu0 %v902
        %v904 = vpop.xlane.xlu0 %903
        %v905 = vmul.f32 %v901, %v629
        %v906 = vmul.f32 %v904, %v629
        %v907 = vmul.f32 %v895, %v895
        %v908 = vmul.f32 %v896, %v896
        %v909 = vsub.f32 %v905, %v907
        %v910 = vsub.f32 %v906, %v908
        %v911 = vmax.f32 %v909, 0.0
        %v912 = vmax.f32 %v910, 0.0
        %v913 = vsub.f32 %v883, %v895
        %v914 = vsub.f32 %v886, %v896
        %v915 = vadd.f32 %v911, 0.0001
        %v916 = vadd.f32 %v912, 0.0001
        %v917 = vrsqrt.pop %v915
        %v918 = vrsqrt.pop %v916
        %v919 = vmul.f32 %v913, %v917
        %v920 = vmul.f32 %v914, %v918
        %s921 = scalar_lea.vmem %s4, 1
        %v922 = vld [vmem:[%s921] sm:$0x1]
        %v924 = vlaneseq
        %v925 = vshrl.u32 %v924, 7
        %v926 = vsub.s32 0, %v925
        %v927 = vrot.slane %v922, %v926
        %v929 = vmul.f32 %v919, %v927
        %v930 = vmul.f32 %v920, %v927
        %s931 = scalar_lea.vmem %s5, 1
        %v932 = vld [vmem:[%s931] sm:$0x1]
        %v934 = vlaneseq
        %v935 = vshrl.u32 %v934, 7
        %v936 = vsub.s32 0, %v935
        %v937 = vrot.slane %v932, %v936
        %v939 = vadd.f32 %v929, %v937
        %v940 = vadd.f32 %v930, %v937
        %v941 = vmax.f32 %v939, 0.0
        %v942 = vmax.f32 %v940, 0.0
        %v943 = vmul.f32 %v941, %v679
        %v944 = vmul.f32 %v942, %v684
        %v945 = vpack.c.bf16 %v944, %v943
        %v947 = vunpack.c.l.b16 %v945
        %v948 = vunpack.c.h.b16 %v945
        %v949 = vpack.c.b16 %v947, %v947
        %v950 = vpack.c.b16 %v948, %v948
        %v952 = vshrl.u32 %v949, 16
        %v954 = vrot.slane %v952, 7
        %v955 = vshll.u32 %v949, 16
        %v957 = vor.u32 %v954, %v955
        %v958 = vrot.slane %v954, 4
        %v960 = vshrl.u32 %v950, 16
        %v962 = vrot.slane %v960, 7
        %v963 = vshll.u32 %v950, 16
        %v965 = vor.u32 %v962, %v963
        %v966 = vsel %vm416, %v958, %v965
        %v967 = vrot.slane %v962, 4
        %v971 = vld [vmem:[#allocation2] sm:$0xf]
        %v972 = vsel %vm438, %v957, %v971
        %973 = vst [vmem:[#allocation2] sm:$0xf] %v972
        %974 = vst.msk [vmem:[#allocation2 + $0x4] sm:$0xf] %vm442, %v966
        %v975 = vld [vmem:[#allocation2 + $0x8] sm:$0x1]
        %v976 = vsel %vm358, %v967, %v975
        %977 = vst [vmem:[#allocation2 + $0x8] sm:$0x1] %v976
        %v978 = vld [vmem:[#allocation2] sm:$0xf]
        %v979 = vld [vmem:[#allocation2 + $0x4] sm:$0xf]
        %980 = vst.msk [vmem:[#allocation3] sm:$0xf] %vm442, %v978
        %981 = vst.msk [vmem:[#allocation3 + $0x4] sm:$0xf] %vm442, %v979
        %v982 = vld [vmem:[#allocation2] sm:$0xf]
        %v983 = vld [vmem:[#allocation2 + $0x4] sm:$0xf]
        %v984 = vld [vmem:[#allocation2 + $0x8] sm:$0x1]
        %v986 = vshrl.u32 %v982, 16
        %v988 = vrot.slane %v986, 4
        %v989 = vshll.u32 %v982, 16
        %v991 = vrot.slane %v989, 5
        %v992 = vor.u32 %v988, %v991
        %v993 = vrot.slane %v992, 4
        %v995 = vshll.u32 %v983, 16
        %v997 = vrot.slane %v995, 5
        %v998 = vsel %vm456, %v993, %v997
        %v999 = vshrl.u32 %v983, 16
        %v1001 = vrot.slane %v999, 4
        %v1002 = vor.u32 %v1001, %v997
        %v1003 = vrot.slane %v1002, 4
        %v1005 = vshll.u32 %v984, 16
        %v1007 = vrot.slane %v1005, 5
        %v1008 = vsel %vm456, %v1003, %v1007
        %1009 = vrot.lane.b32.xlu0 %v998, 32
        %v1010 = vpop.permute.xlu0 %1009
        %1011 = vrot.lane.b32.xlu0 %v1008, 32
        %v1012 = vpop.permute.xlu0 %1011
        %1015 = vst.msk [vmem:[#allocation3] sm:$0xf] %vm487, %v1010
        %1016 = vst.msk [vmem:[#allocation3 + $0x4] sm:$0xf] %vm487, %v1012
        %v1017 = vld [vmem:[#allocation2] sm:$0xe]
        %v1018 = vld [vmem:[#allocation2 + $0x4] sm:$0xf]
        %v1019 = vld [vmem:[#allocation2 + $0x8] sm:$0x1]
        %v1023 = vrot.slane %v1017, 5
        %v1024 = vrot.slane %v1023, 4
        %v1025 = vrot.slane %v1018, 5
        %v1026 = vsel %vm498, %v1024, %v1025
        %v1027 = vrot.slane %v1025, 4
        %v1028 = vrot.slane %v1019, 5
        %v1029 = vsel %vm498, %v1027, %v1028
        %1030 = vrot.lane.b32.xlu0 %v1026, 64
        %v1031 = vpop.permute.xlu0 %1030
        %1032 = vrot.lane.b32.xlu0 %v1029, 64
        %v1033 = vpop.permute.xlu0 %1032
        %1036 = vst.msk [vmem:[#allocation3] sm:$0xf] %vm512, %v1031
        %1037 = vst.msk [vmem:[#allocation3 + $0x4] sm:$0xf] %vm512, %v1033
        %v1038 = vld [vmem:[#allocation3] sm:$0xf]
        %v1039 = vld [vmem:[#allocation3 + $0x4] sm:$0xf]
        %s1040 = scalar_lea.vmem %s2, 96
        %v1041 = vld [vmem:[%s1040] sm:$0xf]
        %v1042 = vld [vmem:[%s1040 + $0x4] sm:$0xf]
        %v1043 = vld [vmem:[%s1040 + $0x8] sm:$0xf]
        %v1044 = vld [vmem:[%s1040 + $0xc] sm:$0xf]
        %v1045 = vld [vmem:[%s1040 + $0x10] sm:$0xf]
        %v1046 = vld [vmem:[%s1040 + $0x14] sm:$0xf]
        %v1047 = vld [vmem:[%s1040 + $0x18] sm:$0xf]
        %v1048 = vld [vmem:[%s1040 + $0x1c] sm:$0xf]
        %v1049 = vld [vmem:[%s1040 + $0x20] sm:$0xf]
        %v1050 = vld [vmem:[%s1040 + $0x24] sm:$0xf]
        %v1051 = vld [vmem:[%s1040 + $0x28] sm:$0xf]
        %v1052 = vld [vmem:[%s1040 + $0x2c] sm:$0xf]
        %s1053 = scalar_lea.vmem %s3, 2
        %v1054 = vld [vmem:[%s1053] sm:$0x1]
        %v1056 = vlaneseq
        %v1057 = vshrl.u32 %v1056, 7
        %v1058 = vsub.s32 0, %v1057
        %v1059 = vrot.slane %v1054, %v1058
        %v1063 = vunpack.c.l.b16 %v1038
        %v1064 = vunpack.c.l.b16 %v1039
        %v1065 = vpack.c.b16 %v1064, %v1063
        %v1078 = vunpack.c.l.b16 %v1041
        %v1079 = vunpack.c.l.b16 %v1042
        %v1080 = vunpack.c.l.b16 %v1043
        %v1081 = vunpack.c.l.b16 %v1044
        %v1082 = vunpack.c.l.b16 %v1045
        %v1083 = vunpack.c.l.b16 %v1046
        %v1084 = vunpack.c.l.b16 %v1047
        %v1085 = vunpack.c.l.b16 %v1048
        %v1086 = vunpack.c.l.b16 %v1049
        %v1087 = vunpack.c.l.b16 %v1050
        %v1088 = vunpack.c.l.b16 %v1051
        %v1089 = vunpack.c.l.b16 %v1052
        %v1090 = vpack.c.b16 %v1079, %v1078
        %v1091 = vpack.c.b16 %v1081, %v1080
        %v1092 = vpack.c.b16 %v1083, %v1082
        %v1093 = vpack.c.b16 %v1085, %v1084
        %v1094 = vpack.c.b16 %v1087, %v1086
        %v1095 = vpack.c.b16 %v1089, %v1088
        %v1103 = vsel %vm577, %v1065, 0
        %1105 = vmatprep.subr.bf16.mxu0 0
        %1106 = vmatpush1.bf16.msra.mxu0 0
        %1107 = vmatprep.subr.bf16.mxu0 0
        %1108 = vmatpush1.bf16.msra.mxu0 0
        %1109 = vmatprep.subr.bf16.mxu0 0
        %1110 = vmatpush1.bf16.msra.mxu0 %v1095
        %1111 = vmatprep.subr.bf16.mxu0 0
        %1112 = vmatpush1.bf16.msra.mxu0 %v1094
        %1113 = vmatprep.subr.bf16.mxu0 0
        %1114 = vmatpush1.bf16.msra.mxu0 %v1093
        %1115 = vmatprep.subr.bf16.mxu0 0
        %1116 = vmatpush1.bf16.msra.mxu0 %v1092
        %1117 = vmatprep.subr.bf16.mxu0 0
        %1118 = vmatpush1.bf16.msra.mxu0 %v1091
        %1119 = vmatprep.subr.bf16.mxu0 0
        %1120 = vmatpush1.bf16.msra.mxu0 %v1090
        %1121 = vmatprep.subr.bf16.mxu0 0
        %1122 = vmatpush2.bf16.msra.mxu0 0
        %1123 = vmatprep.subr.bf16.mxu0 0
        %1124 = vmatpush2.bf16.msra.mxu0 0
        %1125 = vmatprep.subr.bf16.mxu0 0
        %1126 = vmatpush2.bf16.msra.mxu0 0
        %1127 = vmatprep.subr.bf16.mxu0 0
        %1128 = vmatpush2.bf16.msra.mxu0 0
        %1129 = vmatprep.subr.bf16.mxu0 0
        %1130 = vmatpush2.bf16.msra.mxu0 0
        %1131 = vmatprep.subr.bf16.mxu0 0
        %1132 = vmatpush2.bf16.msra.mxu0 0
        %1133 = vmatprep.subr.bf16.mxu0 0
        %1134 = vmatpush2.bf16.msra.mxu0 0
        %1135 = vmatprep.subr.bf16.mxu0 0
        %1136 = vmatpush2.bf16.msra.mxu0 0
        %1137 = vmatprep.mubr.bf16.mxu0 0
        %1138 = vmatmul.mubr.bf16.gmra.mxu0 %v1103
        %v1139 = vpop.f32.mrf.mxu0
        %v1140 = vadd.f32 %v1059, %v1139
        %v1141 = vpop.f32.mrf.mxu0
        %v1142 = vpop.f32.mrf.mxu0
        %v1143 = vadd.f32 %v1059, %v1142
        %v1144 = vpop.f32.mrf.mxu0
        %1145 = vdwg.mxu0
        %v1146 = vsel %vm622, %v1140, 0.0
        %1147 = vadd.xlane.f32.xlu0 %v1146
        %v1148 = vpop.xlane.xlu0 %1147
        %v1149 = vsel %vm622, %v1143, 0.0
        %1150 = vadd.xlane.f32.xlu0 %v1149
        %v1151 = vpop.xlane.xlu0 %1150
        %v1152 = vmul.f32 %v1148, %v629
        %v1153 = vmul.f32 %v1151, %v629
        %v1154 = vmul.f32 %v1140, %v1140
        %v1155 = vmul.f32 %v1143, %v1143
        %v1156 = vsel %vm622, %v1154, 0.0
        %1157 = vadd.xlane.f32.xlu0 %v1156
        %v1158 = vpop.xlane.xlu0 %1157
        %v1159 = vsel %vm622, %v1155, 0.0
        %1160 = vadd.xlane.f32.xlu0 %v1159
        %v1161 = vpop.xlane.xlu0 %1160
        %v1162 = vmul.f32 %v1158, %v629
        %v1163 = vmul.f32 %v1161, %v629
        %v1164 = vmul.f32 %v1152, %v1152
        %v1165 = vmul.f32 %v1153, %v1153
        %v1166 = vsub.f32 %v1162, %v1164
        %v1167 = vsub.f32 %v1163, %v1165
        %v1168 = vmax.f32 %v1166, 0.0
        %v1169 = vmax.f32 %v1167, 0.0
        %v1170 = vsub.f32 %v1140, %v1152
        %v1171 = vsub.f32 %v1143, %v1153
        %v1172 = vadd.f32 %v1168, 0.0001
        %v1173 = vadd.f32 %v1169, 0.0001
        %v1174 = vrsqrt.pop %v1172
        %v1175 = vrsqrt.pop %v1173
        %v1176 = vmul.f32 %v1170, %v1174
        %v1177 = vmul.f32 %v1171, %v1175
        %s1178 = scalar_lea.vmem %s4, 2
        %v1179 = vld [vmem:[%s1178] sm:$0x1]
        %v1181 = vlaneseq
        %v1182 = vshrl.u32 %v1181, 7
        %v1183 = vsub.s32 0, %v1182
        %v1184 = vrot.slane %v1179, %v1183
        %v1186 = vmul.f32 %v1176, %v1184
        %v1187 = vmul.f32 %v1177, %v1184
        %s1188 = scalar_lea.vmem %s5, 2
        %v1189 = vld [vmem:[%s1188] sm:$0x1]
        %v1191 = vlaneseq
        %v1192 = vshrl.u32 %v1191, 7
        %v1193 = vsub.s32 0, %v1192
        %v1194 = vrot.slane %v1189, %v1193
        %v1196 = vadd.f32 %v1186, %v1194
        %v1197 = vadd.f32 %v1187, %v1194
        %v1198 = vmax.f32 %v1196, 0.0
        %v1199 = vmax.f32 %v1197, 0.0
        %v1200 = vmul.f32 %v1198, %v679
        %v1201 = vmul.f32 %v1199, %v684
        %v1202 = vpack.c.bf16 %v1201, %v1200
        %v1204 = vunpack.c.l.b16 %v1202
        %v1205 = vunpack.c.h.b16 %v1202
        %v1206 = vpack.c.b16 %v1204, %v1204
        %v1207 = vpack.c.b16 %v1205, %v1205
        %v1209 = vshrl.u32 %v1206, 16
        %v1211 = vrot.slane %v1209, 7
        %v1212 = vshll.u32 %v1206, 16
        %v1214 = vor.u32 %v1211, %v1212
        %v1215 = vrot.slane %v1211, 4
        %v1217 = vshrl.u32 %v1207, 16
        %v1219 = vrot.slane %v1217, 7
        %v1220 = vshll.u32 %v1207, 16
        %v1222 = vor.u32 %v1219, %v1220
        %v1223 = vsel %vm416, %v1215, %v1222
        %v1224 = vrot.slane %v1219, 4
        %v1228 = vld [vmem:[#allocation2] sm:$0xf]
        %v1229 = vsel %vm438, %v1214, %v1228
        %1230 = vst [vmem:[#allocation2] sm:$0xf] %v1229
        %1231 = vst.msk [vmem:[#allocation2 + $0x4] sm:$0xf] %vm442, %v1223
        %v1232 = vld [vmem:[#allocation2 + $0x8] sm:$0x1]
        %v1233 = vsel %vm358, %v1224, %v1232
        %1234 = vst [vmem:[#allocation2 + $0x8] sm:$0x1] %v1233
        %v1235 = vld [vmem:[#allocation2] sm:$0xf]
        %v1236 = vld [vmem:[#allocation2 + $0x4] sm:$0xf]
        %v1237 = vld [vmem:[#allocation2 + $0x8] sm:$0x1]
        %v1238 = vld [vmem:[%s6] sm:$0xf]
        %v1239 = vld [vmem:[%s6 + $0x4] sm:$0xf]
        %v1240 = vld [vmem:[%s6 + $0x8] sm:$0xf]
        %v1241 = vld [vmem:[%s6 + $0xc] sm:$0xf]
        %v1242 = vld [vmem:[%s7] sm:$0x1]
        %v1244 = vlaneseq
        %v1245 = vshrl.u32 %v1244, 7
        %v1246 = vsub.s32 0, %v1245
        %v1247 = vrot.slane %v1242, %v1246
        %v1252 = vunpack.c.l.b16 %v1235
        %v1253 = vunpack.c.l.b16 %v1236
        %v1254 = vunpack.c.l.b16 %v1237
        %v1255 = vpack.c.b16 %v1253, %v1252
        %v1256 = vpack.c.b16 %v1254, %v1254
        %vm1257 = vsmask.f32 7424
        %v1259 = vshrl.u32 %v1255, 16
        %v1261 = vshll.u32 %v1255, 16
        %v1263 = vrot.slane %v1261, 1
        %v1264 = vor.u32 %v1259, %v1263
        %v1266 = vshll.u32 %v1256, 16
        %v1268 = vrot.slane %v1266, 1
        %v1269 = vsel %vm1257, %v1264, %v1268
        %v1274 = vunpack.c.l.b16 %v1238
        %v1275 = vunpack.c.l.b16 %v1239
        %v1276 = vunpack.c.l.b16 %v1240
        %v1277 = vunpack.c.l.b16 %v1241
        %v1278 = vpack.c.b16 %v1275, %v1274
        %v1279 = vpack.c.b16 %v1277, %v1276
        %v1283 = vsel %vm622, %v1269, 0
        %1285 = vmatprep.subr.bf16.mxu0 0
        %1286 = vmatpush1.bf16.msra.mxu0 0
        %1287 = vmatprep.subr.bf16.mxu0 0
        %1288 = vmatpush1.bf16.msra.mxu0 0
        %1289 = vmatprep.subr.bf16.mxu0 0
        %1290 = vmatpush1.bf16.msra.mxu0 0
        %1291 = vmatprep.subr.bf16.mxu0 0
        %1292 = vmatpush1.bf16.msra.mxu0 0
        %1293 = vmatprep.subr.bf16.mxu0 0
        %1294 = vmatpush1.bf16.msra.mxu0 0
        %1295 = vmatprep.subr.bf16.mxu0 0
        %1296 = vmatpush1.bf16.msra.mxu0 0
        %1297 = vmatprep.subr.bf16.mxu0 0
        %1298 = vmatpush1.bf16.msra.mxu0 %v1279
        %1299 = vmatprep.subr.bf16.mxu0 0
        %1300 = vmatpush1.bf16.msra.mxu0 %v1278
        %1301 = vmatprep.subr.bf16.mxu0 0
        %1302 = vmatpush2.bf16.msra.mxu0 0
        %1303 = vmatprep.subr.bf16.mxu0 0
        %1304 = vmatpush2.bf16.msra.mxu0 0
        %1305 = vmatprep.subr.bf16.mxu0 0
        %1306 = vmatpush2.bf16.msra.mxu0 0
        %1307 = vmatprep.subr.bf16.mxu0 0
        %1308 = vmatpush2.bf16.msra.mxu0 0
        %1309 = vmatprep.subr.bf16.mxu0 0
        %1310 = vmatpush2.bf16.msra.mxu0 0
        %1311 = vmatprep.subr.bf16.mxu0 0
        %1312 = vmatpush2.bf16.msra.mxu0 0
        %1313 = vmatprep.subr.bf16.mxu0 0
        %1314 = vmatpush2.bf16.msra.mxu0 0
        %1315 = vmatprep.subr.bf16.mxu0 0
        %1316 = vmatpush2.bf16.msra.mxu0 0
        %1317 = vmatprep.mubr.bf16.mxu0 0
        %1318 = vmatmul.mubr.bf16.gmra.mxu0 %v1283
        %v1319 = vpop.f32.mrf.mxu0
        %v1320 = vadd.f32 %v1247, %v1319
        %v1321 = vpop.f32.mrf.mxu0
        %v1322 = vpop.f32.mrf.mxu0
        %v1323 = vadd.f32 %v1247, %v1322
        %v1324 = vpop.f32.mrf.mxu0
        %1325 = vdwg.mxu0
        %1326 = vxpose.xlu0.b32.start [1/16] %v1320, 128
        %1327 = vxpose.xlu0.b32.cont [2/16] %v1323, 128
        %1328 = vxpose.xlu0.b32.cont [3/16] 0.0, 128
        %1329 = vxpose.xlu0.b32.cont [4/16] 0.0, 128
        %1330 = vxpose.xlu0.b32.cont [5/16] 0.0, 128
        %1331 = vxpose.xlu0.b32.cont [6/16] 0.0, 128
        %1332 = vxpose.xlu0.b32.cont [7/16] 0.0, 128
        %1333 = vxpose.xlu0.b32.cont [8/16] 0.0, 128
        %1334 = vxpose.xlu0.b32.cont [9/16] 0.0, 128
        %1335 = vxpose.xlu0.b32.cont [10/16] 0.0, 128
        %1336 = vxpose.xlu0.b32.cont [11/16] 0.0, 128
        %1337 = vxpose.xlu0.b32.cont [12/16] 0.0, 128
        %1338 = vxpose.xlu0.b32.cont [13/16] 0.0, 128
        %1339 = vxpose.xlu0.b32.cont [14/16] 0.0, 128
        %1340 = vxpose.xlu0.b32.cont [15/16] 0.0, 128
        %1341 = vxpose.xlu0.b32.end [16/16] 0.0, 128
        %v1342 = vpop.trf.xlu0
        %v1343 = vpop.trf.xlu0
        %v1344 = vpop.trf.xlu0
        %v1345 = vpop.trf.xlu0
        %v1346 = vpop.trf.xlu0
        %v1347 = vpop.trf.xlu0
        %v1348 = vpop.trf.xlu0
        %v1349 = vpop.trf.xlu0
        %v1350 = vpop.trf.xlu0
        %v1351 = vpop.trf.xlu0
        %v1352 = vpop.trf.xlu0
        %v1353 = vpop.trf.xlu0
        %v1354 = vpop.trf.xlu0
        %v1355 = vpop.trf.xlu0
        %v1356 = vpop.trf.xlu0
        %v1357 = vpop.trf.xlu0
        %v1358 = vadd.f32 %v319, %v1342
        %v1359 = vmul.f32 %v1358, %v371
        %vm1360 = vcmask 125952
        %1361 = vst.msk [vmem:[%s309] sm:$0xf] %vm1360, %v1359
        %s1362 = sand.u32 %s208, 1
        %s1363 = scalar_lea.sflag [#allocation5], %s1362
        %s1364 = sand.u32 %s208, 1
        %s1365 = smul.addr %s1364, 4
        %s1366 = scalar_lea.vmem [#allocation4], %s1365
        // Predicated region
        $region53: #{tpu_custom_call.1} parent=51 // pred_check
          %p1367 = pneg %p218
        $region54: #{tpu_custom_call.1} parent=51 // pred_check_branch
          %1369 = sbr.rel (%p1367) target = $region56
        $region55: #{tpu_custom_call.1} parent=51 // pred_region
          %s1371 = ssub.s32 64, 64
          %1372 = vsyncadd %s1363, %s1371
          %s1373 = smul.addr %s22, 64
          %s1374 = scalar_lea.hbm %s8, %s1373
          %s1376 = sshll.u32 %s1366, 4
          %s1377 = int_to_ptr.vmem [resolvable:$true] %s1376
          %1379 = dma.vmem_to_hbm [thread:$0]  %s1377, 64, %s1374, %s1363
        $region56: #{tpu_custom_call.1} parent=51 // pred_fallthru
          _
      $region52: #{tpu_custom_call.1} parent=5 // pred_fallthru
        _
      %p1380 = scmp.le.s32.totalorder 2, %s17
      // Predicated region
      $region57: #{tpu_custom_call.1} parent=5 // pred_check
        %p1381 = pneg %p1380
      $region58: #{tpu_custom_call.1} parent=5 // pred_check_branch
        %1383 = sbr.rel (%p1381) target = $region60
      $region59: #{tpu_custom_call.1} parent=5 // pred_region
        %s1384 = ssub.s32 %s17, 2
        // Predicated region
        $region61: #{tpu_custom_call.1} parent=59 // pred_check
          %p1385 = pneg %p224
        $region62: #{tpu_custom_call.1} parent=59 // pred_check_branch
          %1387 = sbr.rel (%p1385) target = $region64
        $region63: #{tpu_custom_call.1} parent=59 // pred_region
          %s1388 = sand.u32 %s209, 1
          %s1389 = scalar_lea.sflag [#allocation5], %s1388
          %s1390 = sand.u32 %s209, 1
          %s1391 = smul.addr %s1390, 4
          %s1392 = scalar_lea.vmem [#allocation4], %s1391
          %1393 = dma.done %s1389, 64
        $region64: #{tpu_custom_call.1} parent=59 // pred_fallthru
          _
      $region60: #{tpu_custom_call.1} parent=5 // pred_fallthru
        _
    $region6: #{tpu_custom_call.1} parent=1 // loop_footer
      %s21 = sadd.s32 1, %s17
    $region7: #{tpu_custom_call.1} parent=1 // loop_footer_branch
      %16 = sbr.rel target = $region3
    $region8: #{tpu_custom_call.1} parent=1 // loop_exit
      _
    %1394 = vsyncpa [#allocation5], 1
    %s1395 = scalar_lea.sflag [#allocation5], 1
    %1396 = vsyncpa %s1395, 1

</llo_original>
